<compile_context>
chip_gen: v5e
topology: v5e:2x2
jax: 0.10.0
libtpu: 0.0.40
codegen_flags: <defaults>
</compile_context>

<pallas_src>
import functools

import jax
import jax.numpy as jnp
from jax import lax
from jax.experimental import pallas as pl
from jax.experimental.pallas import tpu as pltpu

EPS = 1e-5  # nn.BatchNorm2d default eps


def _vmem_limit_bytes():
    """Generation-aware scoped-VMEM cap (v7x has 64 MiB/TC vs 128 on v5e/v6e)."""
    cap = 64 * 1024 * 1024
    try:
        info = pltpu.get_tpu_info()
        cap = int(getattr(info, "vmem_capacity_bytes", cap))
    except Exception:
        pass
    # Leave headroom for Mosaic-internal scratch; never exceed 96 MiB even on
    # 128-MiB parts (BlockSpec double-buffers every input and output).
    return int(min(cap * 3 // 4, 96 * 1024 * 1024))


def _pick_strip_height(h, tile_h):
    """Largest divisor of h that is <= tile_h and a multiple of 8 (or h itself)."""
    cap = max(1, min(tile_h, h))
    if cap == h:
        return h
    for d in range(cap, 0, -1):
        if h % d == 0 and d % 8 == 0:
            return d
    return h  # fall back to whole-image strips (keeps sublane alignment)


def _band_weights(w_oihw, width):
    """Fold kx taps + channel contraction + SAME W-padding into banded matrices.

    out_row_y[x*Cout+co] = sum_ky  in_row_{y+ky-1}[p*Cin+ci] * B[ky][p*Cin+ci, x*Cout+co]
    with B[ky][(x+kx-1)*Cin+ci, x*Cout+co] = w[co, ci, ky, kx]
    (out-of-range taps dropped == zero padding along W).

    Returns (3, W*Cin, W*Cout) float32.
    """
    cout, cin, kh, kw = w_oihw.shape
    wf = w_oihw.astype(jnp.float32)
    mats = []
    for ky in range(kh):
        m = jnp.zeros((width * cin, width * cout), jnp.float32)
        for kx in range(kw):
            # sel[p, x] = 1 iff p == x + kx - 1
            sel = jnp.eye(width, width, k=1 - kx, dtype=jnp.float32)
            m = m + jnp.einsum("px,oi->pixo", sel, wf[:, :, ky, kx]).reshape(
                width * cin, width * cout)
        mats.append(m)
    return jnp.stack(mats, axis=0)


def _conv1_kernel(xs_ref, wb_ref, yh_ref, s_ref, ss_ref):
    """conv1 over one (batch, row-strip) tile, packed (rows, W*C) layout.

    xs_ref : (1, 1, TH+4, W*Cin)   input rows incl. 2-row halo each side
    wb_ref : (3, W*Cin, W*Cmid)    banded weights
    yh_ref : (1, 1, TH+2, W*Cmid)  pre-BN conv1 output incl. 1-row halo (mxu dtype)
    s_ref  : (1, 1, 1, W*Cmid)     per-strip sum   over the TH interior rows (f32)
    ss_ref : (1, 1, 1, W*Cmid)     per-strip sumsq over the TH interior rows (f32)
    """
    th2 = yh_ref.shape[2]                        # TH + 2
    acc = jnp.zeros((th2, wb_ref.shape[-1]), jnp.float32)
    for ky in range(3):                          # 3 MXU matmuls, K = W*Cin
        # vld-with-offset directly from the ref per tap (no vreg sublane shift)
        acc += jnp.dot(xs_ref[0, 0, ky:ky + th2, :], wb_ref[ky],
                       preferred_element_type=jnp.float32)
    yh_ref[0, 0] = acc.astype(yh_ref.dtype)      # bf16 store halves HBM traffic
    center = acc[1:th2 - 1, :]                   # interior rows only (no halo)
    s_ref[0, 0] = jnp.sum(center, axis=0, keepdims=True)
    ss_ref[0, 0] = jnp.sum(center * center, axis=0, keepdims=True)


def _bn_conv2_kernel(yh_ref, wb_ref, sc_ref, sh_ref, y2_ref, s_ref, ss_ref, h_ref):
    """BN1 + ReLU + conv2 over one (batch, row-strip) tile.

    yh_ref : (1, 1, TH+2, W*Cmid)  pre-BN conv1 output incl. 1-row halo
    wb_ref : (3, W*Cmid, W*Cout)   banded conv2 weights
    sc/sh  : (1, W*Cmid)           BN1 scale/shift, pre-broadcast over W lanes (f32)
    y2_ref : (1, TH, W*Cout)       pre-BN conv2 output (mxu dtype)
    s_/ss_ : (1, 1, 1, W*Cout)     per-strip partial stats for BN2 (f32)
    h_ref  : (TH+2, W*Cmid)        VMEM staging scratch for the BN'd activation
    """
    s_idx = pl.program_id(1)
    n_strips = pl.num_programs(1)
    th = y2_ref.shape[1]

    y = yh_ref[0, 0].astype(jnp.float32)          # (TH+2, W*Cmid)
    h = jnp.maximum(y * sc_ref[...] + sh_ref[...], 0.0)

    # Image-boundary halo rows are conv2's zero padding: they must be zero
    # *after* BN+ReLU, so mask them here (interior halo rows are real data).
    rows = lax.broadcasted_iota(jnp.int32, h.shape, 0)
    top_ok = jnp.logical_or(s_idx > 0, rows > 0)
    bot_ok = jnp.logical_or(s_idx < n_strips - 1, rows < th + 1)
    h = jnp.where(jnp.logical_and(top_ok, bot_ok), h, 0.0)

    # Stage into VMEM so the ky taps are vld-with-offset, not vreg sublane shifts.
    h_ref[...] = h.astype(h_ref.dtype)

    acc = jnp.zeros((th, wb_ref.shape[-1]), jnp.float32)
    for ky in range(3):                           # 3 MXU matmuls, K = W*Cmid
        acc += jnp.dot(h_ref[ky:ky + th, :], wb_ref[ky],
                       preferred_element_type=jnp.float32)
    y2_ref[0] = acc.astype(y2_ref.dtype)
    s_ref[0, 0] = jnp.sum(acc, axis=0, keepdims=True)
    ss_ref[0, 0] = jnp.sum(acc * acc, axis=0, keepdims=True)


def _finalize_stats(psum, psumsq, count, width, c, gamma, beta):
    """Per-strip partials -> per-channel BN scale/shift as a (1, W*C) lane row."""
    total = jnp.sum(psum, axis=(0, 1, 2)).reshape(width, c).sum(axis=0)
    total_sq = jnp.sum(psumsq, axis=(0, 1, 2)).reshape(width, c).sum(axis=0)
    mean = total / count
    # NOTE: single-pass E[x^2]-E[x]^2 variance (clamped >= 0); a centered
    # second pass would cost an extra read of the activation.
    var = jnp.maximum(total_sq / count - mean * mean, 0.0)
    scale = gamma.astype(jnp.float32) * lax.rsqrt(var + EPS)
    shift = beta.astype(jnp.float32) - mean * scale
    return (jnp.tile(scale, width).reshape(1, width * c),
            jnp.tile(shift, width).reshape(1, width * c))


@functools.partial(jax.jit, static_argnames=("tile_h", "mxu_dtype"))
def double_conv(x_nchw, w1_oihw, g1, b1, w2_oihw, g2, b2, *,
                tile_h=128, mxu_dtype=jnp.bfloat16):
    """Pallas DoubleConv forward.  x_nchw: (N, Cin, H, W) f32 -> (N, Cout, H, W) f32."""
    n, cin, h, w = x_nchw.shape
    cmid = w1_oihw.shape[0]
    cout = w2_oihw.shape[0]
    th = _pick_strip_height(h, tile_h)            # row-strip height
    ns = h // th                                  # strips per image

    lin, lmid, lout = w * cin, w * cmid, w * cout  # packed lane widths
    if max(lin, lmid, lout) > 512:
        # TODO(synk): add a channels-last tiling (9 dots with K=Cin) for large
        # W*C feature maps; the banded-weight packing is quadratic in W and is
        # gated to small lane widths (VMEM + zero-band FLOP inflation).
        raise NotImplementedError("banded-weight path gated to W*C <= 512 lanes")

    # ---- layout glue (single cheap pass over the small-Cin input) ----
    # TODO(synk): keep the packed NHWC layout end-to-end in the surrounding
    # model to drop these transposes; BatchNorm running_mean/running_var
    # buffer updates (training-time side effect) are not materialized.
    x_rows = jnp.transpose(x_nchw, (0, 2, 3, 1)).astype(jnp.float32).reshape(n, h, lin)
    xp = jnp.pad(x_rows, ((0, 0), (2, 2), (0, 0)))               # H padding only
    if ns == 1:
        xs = xp[:, None, :, :].astype(mxu_dtype)                 # (N, 1, H+4, W*Cin)
    else:
        # TODO(synk): replace this overlapping-window materialization with a
        # pl.Element row-offset BlockSpec (or a manual make_async_copy window)
        # so the halo'd read comes straight from the padded input; with the
        # larger th the inflation is only (th+4)/th.
        xs = jnp.stack([xp[:, s * th:s * th + th + 4, :] for s in range(ns)],
                       axis=1).astype(mxu_dtype)                 # (N, S, TH+4, W*Cin)

    wb1 = _band_weights(w1_oihw, w).astype(mxu_dtype)            # (3, W*Cin,  W*Cmid)
    wb2 = _band_weights(w2_oihw, w).astype(mxu_dtype)            # (3, W*Cmid, W*Cout)

    grid = (n, ns)
    cparams = pltpu.CompilerParams(
        dimension_semantics=("parallel", "parallel"),
        vmem_limit_bytes=_vmem_limit_bytes())

    # ---- pass 1: conv1 (+ per-strip partial BN1 stats) ----
    y1h, s1, ss1 = pl.pallas_call(
        _conv1_kernel,
        grid=grid,
        in_specs=[
            pl.BlockSpec((1, 1, th + 4, lin), lambda i, j: (i, j, 0, 0)),
            pl.BlockSpec((3, lin, lmid), lambda i, j: (0, 0, 0)),
        ],
        out_specs=[
            pl.BlockSpec((1, 1, th + 2, lmid), lambda i, j: (i, j, 0, 0)),
            pl.BlockSpec((1, 1, 1, lmid), lambda i, j: (i, j, 0, 0)),
            pl.BlockSpec((1, 1, 1, lmid), lambda i, j: (i, j, 0, 0)),
        ],
        out_shape=[
            jax.ShapeDtypeStruct((n, ns, th + 2, lmid), mxu_dtype),   # bf16 intermediate
            jax.ShapeDtypeStruct((n, ns, 1, lmid), jnp.float32),
            jax.ShapeDtypeStruct((n, ns, 1, lmid), jnp.float32),
        ],
        compiler_params=cparams,
    )(xs, wb1)

    sc1, sh1 = _finalize_stats(s1, ss1, float(n * h * w), w, cmid, g1, b1)

    # ---- pass 2: BN1 + ReLU + conv2 (+ per-strip partial BN2 stats) ----
    y2, s2, ss2 = pl.pallas_call(
        _bn_conv2_kernel,
        grid=grid,
        in_specs=[
            pl.BlockSpec((1, 1, th + 2, lmid), lambda i, j: (i, j, 0, 0)),
            pl.BlockSpec((3, lmid, lout), lambda i, j: (0, 0, 0)),
            pl.BlockSpec((1, lmid), lambda i, j: (0, 0)),
            pl.BlockSpec((1, lmid), lambda i, j: (0, 0)),
        ],
        out_specs=[
            pl.BlockSpec((1, th, lout), lambda i, j: (i, j, 0)),
            pl.BlockSpec((1, 1, 1, lout), lambda i, j: (i, j, 0, 0)),
            pl.BlockSpec((1, 1, 1, lout), lambda i, j: (i, j, 0, 0)),
        ],
        out_shape=[
            jax.ShapeDtypeStruct((n, h, lout), mxu_dtype),            # bf16 intermediate
            jax.ShapeDtypeStruct((n, ns, 1, lout), jnp.float32),
            jax.ShapeDtypeStruct((n, ns, 1, lout), jnp.float32),
        ],
        scratch_shapes=[pltpu.VMEM((th + 2, lmid), mxu_dtype)],
        compiler_params=cparams,
    )(y1h, wb2, sc1, sh1)

    sc2, sh2 = _finalize_stats(s2, ss2, float(n * h * w), w, cout, g2, b2)

    # ---- fused epilogue: BN2 + ReLU + NHWC->NCHW restore in ONE XLA pass ----
    # (replaces the previous dedicated BN2+ReLU Pallas pass + separate transpose;
    #  removes ~2 HBM round trips over the output tensor).
    y3 = jnp.maximum(
        y2.astype(jnp.float32) * sc2.reshape(1, 1, lout) + sh2.reshape(1, 1, lout),
        0.0)
    return jnp.transpose(y3.reshape(n, h, w, cout), (0, 3, 1, 2))


def _reference(x_nchw, w1, g1, b1, w2, g2, b2):
    """Plain-JAX reference matching PyTorch train-mode DoubleConv."""
    def conv(x, w):
        return lax.conv_general_dilated(
            x, w, window_strides=(1, 1), padding="SAME",
            dimension_numbers=("NCHW", "OIHW", "NCHW"))

    def bn_relu(x, g, b):
        mean = jnp.mean(x, axis=(0, 2, 3), keepdims=True)
        var = jnp.mean((x - mean) ** 2, axis=(0, 2, 3), keepdims=True)
        y = (x - mean) * lax.rsqrt(var + EPS)
        y = y * g.reshape(1, -1, 1, 1) + b.reshape(1, -1, 1, 1)
        return jnp.maximum(y, 0.0)

    h = bn_relu(conv(x_nchw, w1), g1, b1)
    return bn_relu(conv(h, w2), g2, b2)


if __name__ == "__main__":
    key = jax.random.PRNGKey(0)
    N, Cin, H, W = 2, 4, 16, 16
    Cout = 8
    Cmid = Cout  # mid_channels defaults to out_channels

    k = jax.random.split(key, 7)
    x = jax.random.normal(k[0], (N, Cin, H, W), jnp.float32)
    w1 = jax.random.normal(k[1], (Cmid, Cin, 3, 3), jnp.float32) * 0.1
    w2 = jax.random.normal(k[2], (Cout, Cmid, 3, 3), jnp.float32) * 0.1
    g1 = 1.0 + 0.1 * jax.random.normal(k[3], (Cmid,), jnp.float32)
    b1 = 0.1 * jax.random.normal(k[4], (Cmid,), jnp.float32)
    g2 = 1.0 + 0.1 * jax.random.normal(k[5], (Cout,), jnp.float32)
    b2 = 0.1 * jax.random.normal(k[6], (Cout,), jnp.float32)

    ref = _reference(x, w1, g1, b1, w2, g2, b2)

    # f32 MXU path: faithful to the PyTorch module's f32 math (tight check).
    out_f32 = jax.block_until_ready(
        double_conv(x, w1, g1, b1, w2, g2, b2, mxu_dtype=jnp.float32))
    assert out_f32.shape == (N, Cout, H, W), out_f32.shape
    assert jnp.allclose(out_f32, ref, atol=2e-4, rtol=2e-4), (
        float(jnp.max(jnp.abs(out_f32 - ref))))

    # Default fast path: bf16 MXU operands + bf16 intermediates, f32 accumulate
    # and f32 BN/ReLU math (v5e/v6e/v7x).
    out = jax.block_until_ready(double_conv(x, w1, g1, b1, w2, g2, b2))
    assert out.shape == (N, Cout, H, W), out.shape
    assert jnp.allclose(out, ref, atol=1e-1, rtol=1e-1), (
        float(jnp.max(jnp.abs(out - ref))))

    print("KERNEL_OK")
</pallas_src>

<mosaic_0001>
module attributes {stable_mosaic.version = 11 : i64} {
  func.func @_conv1_kernel(%arg0: i32, %arg1: i32, %arg2: memref<1x1x20x64xf32, #tpu.memory_space<vmem>>, %arg3: memref<3x64x128xf32, #tpu.memory_space<vmem>>, %arg4: memref<1x1x18x128xf32, #tpu.memory_space<vmem>>, %arg5: memref<1x1x1x128xf32, #tpu.memory_space<vmem>>, %arg6: memref<1x1x1x128xf32, #tpu.memory_space<vmem>>) attributes {dimension_semantics = [#tpu.dimension_semantics<parallel>, #tpu.dimension_semantics<parallel>], iteration_bounds = array<i64: 2, 1>, scalar_prefetch = 0 : i64, scratch_operands = 0 : i64, tpu.core_type = #tpu.core_type<tc>, window_params = [{transform_indices = @transform_0, window_bounds = array<i64: 1, 1, 20, 64>}, {pipeline_mode = #tpu.pipeline_mode<synchronous>, transform_indices = @transform_1, window_bounds = array<i64: 3, 64, 128>}, {transform_indices = @transform_2, window_bounds = array<i64: 1, 1, 18, 128>}, {transform_indices = @transform_3, window_bounds = array<i64: 1, 1, 1, 128>}, {transform_indices = @transform_4, window_bounds = array<i64: 1, 1, 1, 128>}]} {
    %cst = arith.constant 0.000000e+00 : f32
    %0 = vector.broadcast %cst : f32 to vector<18x128xf32>
    %c0 = arith.constant 0 : index
    %c0_0 = arith.constant 0 : index
    %c0_1 = arith.constant 0 : index
    %c0_2 = arith.constant 0 : index
    %1 = vector.load %arg2[%c0, %c0_0, %c0_1, %c0_2] : memref<1x1x20x64xf32, #tpu.memory_space<vmem>>, vector<1x1x18x64xf32>
    %2 = vector.shape_cast %1 : vector<1x1x18x64xf32> to vector<18x64xf32>
    %c0_3 = arith.constant 0 : index
    %c0_4 = arith.constant 0 : index
    %c0_5 = arith.constant 0 : index
    %3 = vector.load %arg3[%c0_3, %c0_4, %c0_5] : memref<3x64x128xf32, #tpu.memory_space<vmem>>, vector<1x64x128xf32>
    %4 = vector.shape_cast %3 : vector<1x64x128xf32> to vector<64x128xf32>
    %cst_6 = arith.constant dense<0.000000e+00> : vector<18x128xf32>
    %5 = tpu.matmul %2, %4, %cst_6 {dimension_numbers = #tpu.dot_dimension_numbers<[1], [0], [0], [1], [0, 0, 1, 1], [], []>} : vector<18x64xf32>, vector<64x128xf32>, vector<18x128xf32> -> vector<18x128xf32>
    %6 = arith.addf %0, %5 : vector<18x128xf32>
    %c0_7 = arith.constant 0 : index
    %c0_8 = arith.constant 0 : index
    %c1 = arith.constant 1 : index
    %c0_9 = arith.constant 0 : index
    %7 = vector.load %arg2[%c0_7, %c0_8, %c1, %c0_9] : memref<1x1x20x64xf32, #tpu.memory_space<vmem>>, vector<1x1x18x64xf32>
    %8 = vector.shape_cast %7 : vector<1x1x18x64xf32> to vector<18x64xf32>
    %c1_10 = arith.constant 1 : index
    %c0_11 = arith.constant 0 : index
    %c0_12 = arith.constant 0 : index
    %9 = vector.load %arg3[%c1_10, %c0_11, %c0_12] : memref<3x64x128xf32, #tpu.memory_space<vmem>>, vector<1x64x128xf32>
    %10 = vector.shape_cast %9 : vector<1x64x128xf32> to vector<64x128xf32>
    %cst_13 = arith.constant dense<0.000000e+00> : vector<18x128xf32>
    %11 = tpu.matmul %8, %10, %cst_13 {dimension_numbers = #tpu.dot_dimension_numbers<[1], [0], [0], [1], [0, 0, 1, 1], [], []>} : vector<18x64xf32>, vector<64x128xf32>, vector<18x128xf32> -> vector<18x128xf32>
    %12 = arith.addf %6, %11 : vector<18x128xf32>
    %c0_14 = arith.constant 0 : index
    %c0_15 = arith.constant 0 : index
    %c2 = arith.constant 2 : index
    %c0_16 = arith.constant 0 : index
    %13 = vector.load %arg2[%c0_14, %c0_15, %c2, %c0_16] : memref<1x1x20x64xf32, #tpu.memory_space<vmem>>, vector<1x1x18x64xf32>
    %14 = vector.shape_cast %13 : vector<1x1x18x64xf32> to vector<18x64xf32>
    %c2_17 = arith.constant 2 : index
    %c0_18 = arith.constant 0 : index
    %c0_19 = arith.constant 0 : index
    %15 = vector.load %arg3[%c2_17, %c0_18, %c0_19] : memref<3x64x128xf32, #tpu.memory_space<vmem>>, vector<1x64x128xf32>
    %16 = vector.shape_cast %15 : vector<1x64x128xf32> to vector<64x128xf32>
    %cst_20 = arith.constant dense<0.000000e+00> : vector<18x128xf32>
    %17 = tpu.matmul %14, %16, %cst_20 {dimension_numbers = #tpu.dot_dimension_numbers<[1], [0], [0], [1], [0, 0, 1, 1], [], []>} : vector<18x64xf32>, vector<64x128xf32>, vector<18x128xf32> -> vector<18x128xf32>
    %18 = arith.addf %12, %17 : vector<18x128xf32>
    %c0_21 = arith.constant 0 : index
    %c0_22 = arith.constant 0 : index
    %c0_23 = arith.constant 0 : index
    %c0_24 = arith.constant 0 : index
    %19 = vector.load %arg4[%c0_21, %c0_22, %c0_23, %c0_24] : memref<1x1x18x128xf32, #tpu.memory_space<vmem>>, vector<1x1x18x128xf32>
    %20 = vector.shape_cast %19 : vector<1x1x18x128xf32> to vector<18x128xf32>
    %21 = vector.shape_cast %18 : vector<18x128xf32> to vector<1x1x18x128xf32>
    tpu.vector_store %arg4[%c0_21, %c0_22, %c0_23, %c0_24], %21 {strides = array<i32>} : memref<1x1x18x128xf32, #tpu.memory_space<vmem>>, vector<1x1x18x128xf32>,
    %22 = vector.extract_strided_slice %18 {offsets = [1, 0], sizes = [16, 128], strides = [1, 1]} : vector<18x128xf32> to vector<16x128xf32>
    %cst_25 = arith.constant dense<0.000000e+00> : vector<128xf32>
    %23 = vector.multi_reduction <add>, %22, %cst_25 [0] : vector<16x128xf32> to vector<128xf32>
    %24 = vector.shape_cast %23 : vector<128xf32> to vector<1x128xf32>
    %c0_26 = arith.constant 0 : index
    %c0_27 = arith.constant 0 : index
    %c0_28 = arith.constant 0 : index
    %c0_29 = arith.constant 0 : index
    %25 = vector.load %arg5[%c0_26, %c0_27, %c0_28, %c0_29] : memref<1x1x1x128xf32, #tpu.memory_space<vmem>>, vector<1x1x1x128xf32>
    %26 = vector.shape_cast %25 : vector<1x1x1x128xf32> to vector<1x128xf32>
    %27 = vector.shape_cast %24 : vector<1x128xf32> to vector<1x1x1x128xf32>
    tpu.vector_store %arg5[%c0_26, %c0_27, %c0_28, %c0_29], %27 {strides = array<i32>} : memref<1x1x1x128xf32, #tpu.memory_space<vmem>>, vector<1x1x1x128xf32>,
    %28 = arith.mulf %22, %22 : vector<16x128xf32>
    %cst_30 = arith.constant dense<0.000000e+00> : vector<128xf32>
    %29 = vector.multi_reduction <add>, %28, %cst_30 [0] : vector<16x128xf32> to vector<128xf32>
    %30 = vector.shape_cast %29 : vector<128xf32> to vector<1x128xf32>
    %c0_31 = arith.constant 0 : index
    %c0_32 = arith.constant 0 : index
    %c0_33 = arith.constant 0 : index
    %c0_34 = arith.constant 0 : index
    %31 = vector.load %arg6[%c0_31, %c0_32, %c0_33, %c0_34] : memref<1x1x1x128xf32, #tpu.memory_space<vmem>>, vector<1x1x1x128xf32>
    %32 = vector.shape_cast %31 : vector<1x1x1x128xf32> to vector<1x128xf32>
    %33 = vector.shape_cast %30 : vector<1x128xf32> to vector<1x1x1x128xf32>
    tpu.vector_store %arg6[%c0_31, %c0_32, %c0_33, %c0_34], %33 {strides = array<i32>} : memref<1x1x1x128xf32, #tpu.memory_space<vmem>>, vector<1x1x1x128xf32>,
    return
  }
  func.func @transform_0(%arg0: i32, %arg1: i32) -> (i32, i32, i32, i32) {
    %c0_i32 = arith.constant 0 : i32
    %c0_i32_0 = arith.constant 0 : i32
    %c0_i32_1 = arith.constant 0 : i32
    return %arg0, %arg1, %c0_i32, %c0_i32_0 : i32, i32, i32, i32
  }
  func.func @transform_1(%arg0: i32, %arg1: i32) -> (i32, i32, i32) {
    %c0_i32 = arith.constant 0 : i32
    %c0_i32_0 = arith.constant 0 : i32
    %c0_i32_1 = arith.constant 0 : i32
    %c0_i32_2 = arith.constant 0 : i32
    return %c0_i32, %c0_i32_0, %c0_i32_1 : i32, i32, i32
  }
  func.func @transform_2(%arg0: i32, %arg1: i32) -> (i32, i32, i32, i32) {
    %c0_i32 = arith.constant 0 : i32
    %c0_i32_0 = arith.constant 0 : i32
    %c0_i32_1 = arith.constant 0 : i32
    return %arg0, %arg1, %c0_i32, %c0_i32_0 : i32, i32, i32, i32
  }
  func.func @transform_3(%arg0: i32, %arg1: i32) -> (i32, i32, i32, i32) {
    %c0_i32 = arith.constant 0 : i32
    %c0_i32_0 = arith.constant 0 : i32
    %c0_i32_1 = arith.constant 0 : i32
    return %arg0, %arg1, %c0_i32, %c0_i32_0 : i32, i32, i32, i32
  }
  func.func @transform_4(%arg0: i32, %arg1: i32) -> (i32, i32, i32, i32) {
    %c0_i32 = arith.constant 0 : i32
    %c0_i32_0 = arith.constant 0 : i32
    %c0_i32_1 = arith.constant 0 : i32
    return %arg0, %arg1, %c0_i32, %c0_i32_0 : i32, i32, i32, i32
  }
}

module attributes {stable_mosaic.version = 11 : i64} {
  func.func @_bn_conv2_kernel(%arg0: i32, %arg1: i32, %arg2: memref<1x1x18x128xf32, #tpu.memory_space<vmem>>, %arg3: memref<3x128x128xf32, #tpu.memory_space<vmem>>, %arg4: memref<1x128xf32, #tpu.memory_space<vmem>>, %arg5: memref<1x128xf32, #tpu.memory_space<vmem>>, %arg6: memref<1x16x128xf32, #tpu.memory_space<vmem>>, %arg7: memref<1x1x1x128xf32, #tpu.memory_space<vmem>>, %arg8: memref<1x1x1x128xf32, #tpu.memory_space<vmem>>, %arg9: memref<18x128xf32, #tpu.memory_space<vmem>>) attributes {dimension_semantics = [#tpu.dimension_semantics<parallel>, #tpu.dimension_semantics<parallel>], iteration_bounds = array<i64: 2, 1>, scalar_prefetch = 0 : i64, scratch_operands = 1 : i64, tpu.core_type = #tpu.core_type<tc>, window_params = [{transform_indices = @transform_0, window_bounds = array<i64: 1, 1, 18, 128>}, {pipeline_mode = #tpu.pipeline_mode<synchronous>, transform_indices = @transform_1, window_bounds = array<i64: 3, 128, 128>}, {pipeline_mode = #tpu.pipeline_mode<synchronous>, transform_indices = @transform_2, window_bounds = array<i64: 1, 128>}, {pipeline_mode = #tpu.pipeline_mode<synchronous>, transform_indices = @transform_3, window_bounds = array<i64: 1, 128>}, {transform_indices = @transform_4, window_bounds = array<i64: 1, 16, 128>}, {transform_indices = @transform_5, window_bounds = array<i64: 1, 1, 1, 128>}, {transform_indices = @transform_6, window_bounds = array<i64: 1, 1, 1, 128>}]} {
    %c0 = arith.constant 0 : index
    %c0_0 = arith.constant 0 : index
    %c0_1 = arith.constant 0 : index
    %c0_2 = arith.constant 0 : index
    %0 = vector.load %arg2[%c0, %c0_0, %c0_1, %c0_2] : memref<1x1x18x128xf32, #tpu.memory_space<vmem>>, vector<1x1x18x128xf32>
    %1 = vector.shape_cast %0 : vector<1x1x18x128xf32> to vector<18x128xf32>
    %c0_3 = arith.constant 0 : index
    %c0_4 = arith.constant 0 : index
    %2 = vector.load %arg4[%c0_3, %c0_4] : memref<1x128xf32, #tpu.memory_space<vmem>>, vector<1x128xf32>
    %3 = vector.broadcast %2 : vector<1x128xf32> to vector<18x128xf32>
    %4 = arith.mulf %1, %3 : vector<18x128xf32>
    %c0_5 = arith.constant 0 : index
    %c0_6 = arith.constant 0 : index
    %5 = vector.load %arg5[%c0_5, %c0_6] : memref<1x128xf32, #tpu.memory_space<vmem>>, vector<1x128xf32>
    %6 = vector.broadcast %5 : vector<1x128xf32> to vector<18x128xf32>
    %7 = arith.addf %4, %6 : vector<18x128xf32>
    %cst = arith.constant 0.000000e+00 : f32
    %8 = vector.broadcast %cst : f32 to vector<18x128xf32>
    %9 = arith.maximumf %7, %8 : vector<18x128xf32>
    %10 = tpu.iota {dimensions = array<i32: 0>} : vector<18x128xi32>
    %c0_i32 = arith.constant 0 : i32
    %11 = arith.cmpi sgt, %arg1, %c0_i32 : i32
    %c0_i32_7 = arith.constant 0 : i32
    %12 = vector.broadcast %c0_i32_7 : i32 to vector<18x128xi32>
    %13 = arith.cmpi sgt, %10, %12 : vector<18x128xi32>
    %14 = vector.broadcast %11 : i1 to vector<18x128xi1>
    %15 = arith.ori %14, %13 : vector<18x128xi1>
    %c0_i32_8 = arith.constant 0 : i32
    %16 = arith.cmpi slt, %arg1, %c0_i32_8 : i32
    %c17_i32 = arith.constant 17 : i32
    %17 = vector.broadcast %c17_i32 : i32 to vector<18x128xi32>
    %18 = arith.cmpi slt, %10, %17 : vector<18x128xi32>
    %19 = vector.broadcast %16 : i1 to vector<18x128xi1>
    %20 = arith.ori %19, %18 : vector<18x128xi1>
    %21 = arith.andi %15, %20 : vector<18x128xi1>
    %cst_9 = arith.constant 0.000000e+00 : f32
    %22 = vector.broadcast %cst_9 : f32 to vector<18x128xf32>
    %23 = arith.select %21, %9, %22 : vector<18x128xi1>, vector<18x128xf32>
    %c0_10 = arith.constant 0 : index
    %c0_11 = arith.constant 0 : index
    %24 = vector.load %arg9[%c0_10, %c0_11] : memref<18x128xf32, #tpu.memory_space<vmem>>, vector<18x128xf32>
    tpu.vector_store %arg9[%c0_10, %c0_11], %23 {strides = array<i32>} : memref<18x128xf32, #tpu.memory_space<vmem>>, vector<18x128xf32>,
    %cst_12 = arith.constant 0.000000e+00 : f32
    %25 = vector.broadcast %cst_12 : f32 to vector<16x128xf32>
    %c0_13 = arith.constant 0 : index
    %c0_14 = arith.constant 0 : index
    %26 = vector.load %arg9[%c0_13, %c0_14] : memref<18x128xf32, #tpu.memory_space<vmem>>, vector<16x128xf32>
    %c0_15 = arith.constant 0 : index
    %c0_16 = arith.constant 0 : index
    %c0_17 = arith.constant 0 : index
    %27 = vector.load %arg3[%c0_15, %c0_16, %c0_17] : memref<3x128x128xf32, #tpu.memory_space<vmem>>, vector<1x128x128xf32>
    %28 = vector.shape_cast %27 : vector<1x128x128xf32> to vector<128x128xf32>
    %cst_18 = arith.constant dense<0.000000e+00> : vector<16x128xf32>
    %29 = tpu.matmul %26, %28, %cst_18 {dimension_numbers = #tpu.dot_dimension_numbers<[1], [0], [0], [1], [0, 0, 1, 1], [], []>} : vector<16x128xf32>, vector<128x128xf32>, vector<16x128xf32> -> vector<16x128xf32>
    %30 = arith.addf %25, %29 : vector<16x128xf32>
    %c1 = arith.constant 1 : index
    %c0_19 = arith.constant 0 : index
    %31 = vector.load %arg9[%c1, %c0_19] : memref<18x128xf32, #tpu.memory_space<vmem>>, vector<16x128xf32>
    %c1_20 = arith.constant 1 : index
    %c0_21 = arith.constant 0 : index
    %c0_22 = arith.constant 0 : index
    %32 = vector.load %arg3[%c1_20, %c0_21, %c0_22] : memref<3x128x128xf32, #tpu.memory_space<vmem>>, vector<1x128x128xf32>
    %33 = vector.shape_cast %32 : vector<1x128x128xf32> to vector<128x128xf32>
    %cst_23 = arith.constant dense<0.000000e+00> : vector<16x128xf32>
    %34 = tpu.matmul %31, %33, %cst_23 {dimension_numbers = #tpu.dot_dimension_numbers<[1], [0], [0], [1], [0, 0, 1, 1], [], []>} : vector<16x128xf32>, vector<128x128xf32>, vector<16x128xf32> -> vector<16x128xf32>
    %35 = arith.addf %30, %34 : vector<16x128xf32>
    %c2 = arith.constant 2 : index
    %c0_24 = arith.constant 0 : index
    %36 = vector.load %arg9[%c2, %c0_24] : memref<18x128xf32, #tpu.memory_space<vmem>>, vector<16x128xf32>
    %c2_25 = arith.constant 2 : index
    %c0_26 = arith.constant 0 : index
    %c0_27 = arith.constant 0 : index
    %37 = vector.load %arg3[%c2_25, %c0_26, %c0_27] : memref<3x128x128xf32, #tpu.memory_space<vmem>>, vector<1x128x128xf32>
    %38 = vector.shape_cast %37 : vector<1x128x128xf32> to vector<128x128xf32>
    %cst_28 = arith.constant dense<0.000000e+00> : vector<16x128xf32>
    %39 = tpu.matmul %36, %38, %cst_28 {dimension_numbers = #tpu.dot_dimension_numbers<[1], [0], [0], [1], [0, 0, 1, 1], [], []>} : vector<16x128xf32>, vector<128x128xf32>, vector<16x128xf32> -> vector<16x128xf32>
    %40 = arith.addf %35, %39 : vector<16x128xf32>
    %c0_29 = arith.constant 0 : index
    %c0_30 = arith.constant 0 : index
    %c0_31 = arith.constant 0 : index
    %41 = vector.load %arg6[%c0_29, %c0_30, %c0_31] : memref<1x16x128xf32, #tpu.memory_space<vmem>>, vector<1x16x128xf32>
    %42 = vector.shape_cast %41 : vector<1x16x128xf32> to vector<16x128xf32>
    %43 = vector.shape_cast %40 : vector<16x128xf32> to vector<1x16x128xf32>
    tpu.vector_store %arg6[%c0_29, %c0_30, %c0_31], %43 {strides = array<i32>} : memref<1x16x128xf32, #tpu.memory_space<vmem>>, vector<1x16x128xf32>,
    %cst_32 = arith.constant dense<0.000000e+00> : vector<128xf32>
    %44 = vector.multi_reduction <add>, %40, %cst_32 [0] : vector<16x128xf32> to vector<128xf32>
    %45 = vector.shape_cast %44 : vector<128xf32> to vector<1x128xf32>
    %c0_33 = arith.constant 0 : index
    %c0_34 = arith.constant 0 : index
    %c0_35 = arith.constant 0 : index
    %c0_36 = arith.constant 0 : index
    %46 = vector.load %arg7[%c0_33, %c0_34, %c0_35, %c0_36] : memref<1x1x1x128xf32, #tpu.memory_space<vmem>>, vector<1x1x1x128xf32>
    %47 = vector.shape_cast %46 : vector<1x1x1x128xf32> to vector<1x128xf32>
    %48 = vector.shape_cast %45 : vector<1x128xf32> to vector<1x1x1x128xf32>
    tpu.vector_store %arg7[%c0_33, %c0_34, %c0_35, %c0_36], %48 {strides = array<i32>} : memref<1x1x1x128xf32, #tpu.memory_space<vmem>>, vector<1x1x1x128xf32>,
    %49 = arith.mulf %40, %40 : vector<16x128xf32>
    %cst_37 = arith.constant dense<0.000000e+00> : vector<128xf32>
    %50 = vector.multi_reduction <add>, %49, %cst_37 [0] : vector<16x128xf32> to vector<128xf32>
    %51 = vector.shape_cast %50 : vector<128xf32> to vector<1x128xf32>
    %c0_38 = arith.constant 0 : index
    %c0_39 = arith.constant 0 : index
    %c0_40 = arith.constant 0 : index
    %c0_41 = arith.constant 0 : index
    %52 = vector.load %arg8[%c0_38, %c0_39, %c0_40, %c0_41] : memref<1x1x1x128xf32, #tpu.memory_space<vmem>>, vector<1x1x1x128xf32>
    %53 = vector.shape_cast %52 : vector<1x1x1x128xf32> to vector<1x128xf32>
    %54 = vector.shape_cast %51 : vector<1x128xf32> to vector<1x1x1x128xf32>
    tpu.vector_store %arg8[%c0_38, %c0_39, %c0_40, %c0_41], %54 {strides = array<i32>} : memref<1x1x1x128xf32, #tpu.memory_space<vmem>>, vector<1x1x1x128xf32>,
    return
  }
  func.func @transform_0(%arg0: i32, %arg1: i32) -> (i32, i32, i32, i32) {
    %c0_i32 = arith.constant 0 : i32
    %c0_i32_0 = arith.constant 0 : i32
    %c0_i32_1 = arith.constant 0 : i32
    return %arg0, %arg1, %c0_i32, %c0_i32_0 : i32, i32, i32, i32
  }
  func.func @transform_1(%arg0: i32, %arg1: i32) -> (i32, i32, i32) {
    %c0_i32 = arith.constant 0 : i32
    %c0_i32_0 = arith.constant 0 : i32
    %c0_i32_1 = arith.constant 0 : i32
    %c0_i32_2 = arith.constant 0 : i32
    return %c0_i32, %c0_i32_0, %c0_i32_1 : i32, i32, i32
  }
  func.func @transform_2(%arg0: i32, %arg1: i32) -> (i32, i32) {
    %c0_i32 = arith.constant 0 : i32
    %c0_i32_0 = arith.constant 0 : i32
    %c0_i32_1 = arith.constant 0 : i32
    return %c0_i32, %c0_i32_0 : i32, i32
  }
  func.func @transform_3(%arg0: i32, %arg1: i32) -> (i32, i32) {
    %c0_i32 = arith.constant 0 : i32
    %c0_i32_0 = arith.constant 0 : i32
    %c0_i32_1 = arith.constant 0 : i32
    return %c0_i32, %c0_i32_0 : i32, i32
  }
  func.func @transform_4(%arg0: i32, %arg1: i32) -> (i32, i32, i32) {
    %c0_i32 = arith.constant 0 : i32
    %c0_i32_0 = arith.constant 0 : i32
    return %arg0, %arg1, %c0_i32 : i32, i32, i32
  }
  func.func @transform_5(%arg0: i32, %arg1: i32) -> (i32, i32, i32, i32) {
    %c0_i32 = arith.constant 0 : i32
    %c0_i32_0 = arith.constant 0 : i32
    %c0_i32_1 = arith.constant 0 : i32
    return %arg0, %arg1, %c0_i32, %c0_i32_0 : i32, i32, i32, i32
  }
  func.func @transform_6(%arg0: i32, %arg1: i32) -> (i32, i32, i32, i32) {
    %c0_i32 = arith.constant 0 : i32
    %c0_i32_0 = arith.constant 0 : i32
    %c0_i32_1 = arith.constant 0 : i32
    return %arg0, %arg1, %c0_i32, %c0_i32_0 : i32, i32, i32, i32
  }
}

</mosaic_0001>

<llo_original>
// kernel: tile.23
$region0: #{tile.23}
  #allocation0 [shape = 's32[1]{0}', space=sflag, size = 0x4, scoped, tag = 'scoped memory for tile.23']
  %s0 = inlined_call_operand.vmem [shape: f32[8], index: 0, kind: input, shape index: {}]
  %s1 = inlined_call_operand.vmem [shape: f32[16,8], index: 1, kind: output, shape index: {}]
  // Predicated region
  $region2: #{tile.23} parent=0 // pred_check
    _
  $region3: #{tile.23} parent=0 // pred_check_branch
    %3 = sbr.rel (0) target = $region5
  $region4: #{tile.23} parent=0 // pred_region
    _
  $region5: #{tile.23} parent=0 // pred_fallthru
    _
  %v4 = vld [vmem:[%s0] ss:$0 sm:$0xff]
  %5 = vst [vmem:[%s1] sm:$0xff] %v4
  %s6 = scalar_lea.vmem %s1, 8
  %7 = vst [vmem:[%s6] sm:$0xff] %v4

// kernel: tile.24
$region0: #{tile.24}
  %s0 = inlined_call_operand.vmem [shape: f32[16,8], index: 0, kind: input, shape index: {}]
  %s1 = inlined_call_operand.vmem [shape: f32[1,128], index: 1, kind: output, shape index: {}]
  $region1: #{tile.24} parent=0
    #allocation0 [shape = 'u8[4096]{0}', space=vmem, size = 0x1000, scoped, tag = 'scoped mem for output reshape']
    %v2 = vld [vmem:[%s0] sm:$0x1]
    %vm3 = vcmask 64512
    %4 = vst.msk [vmem:[#allocation0] sm:$0x1] %vm3, %v2
    %s5 = scalar_lea.vmem %s0, 15
    %v6 = vld [vmem:[%s5] sm:$0x1]
    %7 = vrot.lane.b32.xlu0 %v6, 120
    %v8 = vpop.permute.xlu0 %7
    %vm9 = vcmask 1048512
    %10 = vst.msk [vmem:[#allocation0] sm:$0x1] %vm9, %v8
    %s11 = scalar_lea.vmem %s0, 14
    %v12 = vld [vmem:[%s11] sm:$0x1]
    %13 = vrot.lane.b32.xlu0 %v12, 112
    %v14 = vpop.permute.xlu0 %13
    %vm15 = vcmask 982912
    %16 = vst.msk [vmem:[#allocation0] sm:$0x1] %vm15, %v14
    %s17 = scalar_lea.vmem %s0, 13
    %v18 = vld [vmem:[%s17] sm:$0x1]
    %19 = vrot.lane.b32.xlu0 %v18, 104
    %v20 = vpop.permute.xlu0 %19
    %vm21 = vcmask 917312
    %22 = vst.msk [vmem:[#allocation0] sm:$0x1] %vm21, %v20
    %s23 = scalar_lea.vmem %s0, 12
    %v24 = vld [vmem:[%s23] sm:$0x1]
    %25 = vrot.lane.b32.xlu0 %v24, 96
    %v26 = vpop.permute.xlu0 %25
    %vm27 = vcmask 851712
    %28 = vst.msk [vmem:[#allocation0] sm:$0x1] %vm27, %v26
    %s29 = scalar_lea.vmem %s0, 11
    %v30 = vld [vmem:[%s29] sm:$0x1]
    %31 = vrot.lane.b32.xlu0 %v30, 88
    %v32 = vpop.permute.xlu0 %31
    %vm33 = vcmask 786112
    %34 = vst.msk [vmem:[#allocation0] sm:$0x1] %vm33, %v32
    %s35 = scalar_lea.vmem %s0, 10
    %v36 = vld [vmem:[%s35] sm:$0x1]
    %37 = vrot.lane.b32.xlu0 %v36, 80
    %v38 = vpop.permute.xlu0 %37
    %vm39 = vcmask 720512
    %40 = vst.msk [vmem:[#allocation0] sm:$0x1] %vm39, %v38
    %s41 = scalar_lea.vmem %s0, 9
    %v42 = vld [vmem:[%s41] sm:$0x1]
    %43 = vrot.lane.b32.xlu0 %v42, 72
    %v44 = vpop.permute.xlu0 %43
    %vm45 = vcmask 654912
    %46 = vst.msk [vmem:[#allocation0] sm:$0x1] %vm45, %v44
    %s47 = scalar_lea.vmem %s0, 8
    %v48 = vld [vmem:[%s47] sm:$0x1]
    %49 = vrot.lane.b32.xlu0 %v48, 64
    %v50 = vpop.permute.xlu0 %49
    %vm51 = vcmask 589312
    %52 = vst.msk [vmem:[#allocation0] sm:$0x1] %vm51, %v50
    %s53 = scalar_lea.vmem %s0, 7
    %v54 = vld [vmem:[%s53] sm:$0x1]
    %55 = vrot.lane.b32.xlu0 %v54, 56
    %v56 = vpop.permute.xlu0 %55
    %vm57 = vcmask 523712
    %58 = vst.msk [vmem:[#allocation0] sm:$0x1] %vm57, %v56
    %s59 = scalar_lea.vmem %s0, 6
    %v60 = vld [vmem:[%s59] sm:$0x1]
    %61 = vrot.lane.b32.xlu0 %v60, 48
    %v62 = vpop.permute.xlu0 %61
    %vm63 = vcmask 458112
    %64 = vst.msk [vmem:[#allocation0] sm:$0x1] %vm63, %v62
    %s65 = scalar_lea.vmem %s0, 5
    %v66 = vld [vmem:[%s65] sm:$0x1]
    %67 = vrot.lane.b32.xlu0 %v66, 40
    %v68 = vpop.permute.xlu0 %67
    %vm69 = vcmask 392512
    %70 = vst.msk [vmem:[#allocation0] sm:$0x1] %vm69, %v68
    %s71 = scalar_lea.vmem %s0, 4
    %v72 = vld [vmem:[%s71] sm:$0x1]
    %73 = vrot.lane.b32.xlu0 %v72, 32
    %v74 = vpop.permute.xlu0 %73
    %vm75 = vcmask 326912
    %76 = vst.msk [vmem:[#allocation0] sm:$0x1] %vm75, %v74
    %s77 = scalar_lea.vmem %s0, 3
    %v78 = vld [vmem:[%s77] sm:$0x1]
    %79 = vrot.lane.b32.xlu0 %v78, 24
    %v80 = vpop.permute.xlu0 %79
    %vm81 = vcmask 261312
    %82 = vst.msk [vmem:[#allocation0] sm:$0x1] %vm81, %v80
    %s83 = scalar_lea.vmem %s0, 2
    %v84 = vld [vmem:[%s83] sm:$0x1]
    %85 = vrot.lane.b32.xlu0 %v84, 16
    %v86 = vpop.permute.xlu0 %85
    %vm87 = vcmask 195712
    %88 = vst.msk [vmem:[#allocation0] sm:$0x1] %vm87, %v86
    %s89 = scalar_lea.vmem %s0, 1
    %v90 = vld [vmem:[%s89] sm:$0x1]
    %91 = vrot.lane.b32.xlu0 %v90, 8
    %v92 = vpop.permute.xlu0 %91
    %vm93 = vcmask 130112
    %94 = vst.msk [vmem:[#allocation0] sm:$0x1] %vm93, %v92
    %s96 = ssub.s32 2, 1
    %v97 = vld [vmem:[#allocation0] sm:%s96]
    %s99 = ssub.s32 2, 1
    %100 = vst [vmem:[%s1] sm:%s99] %v97

// kernel: double_conv.3
$region0: #{double_conv.3}
  #allocation0 [shape = 'u32[]', space=smem, size = 0x4, offset = 0x4, fixed_abs, tag = 'smem constant byte address 0x4 - core index']
  #allocation1 [shape = 'u32[72,128]{1,0:T(1,128)}', space=vmem, size = 0x9000, scoped, tag = 'internal scratch']
  #allocation2 [shape = 'f32[18,128]{1,0:T(8,128)}', space=vmem, size = 0x3000, scoped, tag = 'scratch operand']
  %s0 = inlined_call_operand.vmem [shape: f32[2,1,18,128], index: 0, kind: input, shape index: {}]
  %s1 = inlined_call_operand.vmem [shape: f32[3,128,128], index: 1, kind: input, shape index: {}]
  %s2 = inlined_call_operand.vmem [shape: f32[1,128], index: 2, kind: input, shape index: {}]
  %s3 = inlined_call_operand.vmem [shape: f32[1,128], index: 3, kind: input, shape index: {}]
  %s4 = inlined_call_operand.vmem [shape: f32[2,16,128], index: 4, kind: output, shape index: {0}]
  %s5 = inlined_call_operand.vmem [shape: f32[2,1,1,128], index: 5, kind: output, shape index: {1}]
  %s6 = inlined_call_operand.vmem [shape: f32[2,1,1,128], index: 6, kind: output, shape index: {2}]
  %7 = xla_tuple %s4, %s5, %s6
  %s8 = sld [smem:[#allocation0]]
  $region65: #{double_conv.3} parent=0
    _
  %s10 = ssub.s32 1, %s8
  %s11 = scalar_select 0, %s10, %s8
  loop: start=0, step=1, limit=4
  $region2: #{double_conv.3} parent=0 // loop_pre_header
    _
  $region3: #{double_conv.3} parent=0 // loop_header
    %s13 = sphi 0, %s17
    %p14 = scmp.ge.s32.totalorder %s13, 4
    %s20 = sphi 0, %s32
    %s21 = sphi 0, %s28
    %s22 = sphi 0, %s20
    %s23 = sphi 0, %s21
    %s24 = sphi 0, %s22
    %s25 = sphi 0, %s23
    %s37 = sphi 0, %s39
    %s40 = sphi 0, %s37
    %s41 = sphi 0, %s40
    %s57 = sphi 0, %s41
    %s61 = sphi 0, %s61
    %s63 = sphi 0, %s61
    %s64 = sphi 0, %s63
    %s78 = sphi 0, %s64
    %s82 = sphi 0, %s82
    %s84 = sphi 0, %s82
    %s85 = sphi 0, %s84
    %s99 = sphi 0, %s85
    %s103 = sphi 0, %s103
    %s105 = sphi 0, %s103
    %s106 = sphi 0, %s105
    %s120 = sphi 0, %s106
    %s128 = sphi 0, %s130
    %s131 = sphi 0, %s128
    %s132 = sphi 0, %s131
    %s148 = sphi 0, %s132
    %s156 = sphi 0, %s158
    %s159 = sphi 0, %s156
    %s160 = sphi 0, %s159
    %s176 = sphi 0, %s160
    %s184 = sphi 0, %s186
    %s187 = sphi 0, %s184
    %s188 = sphi 0, %s187
    %s204 = sphi 0, %s188
  $region4: #{double_conv.3} parent=0 // loop_header_branch
    %16 = sbr.rel (%p14) target = $region8
  $region5: #{double_conv.3} parent=0 // loop_body
    %s18 = ssub.s32 %s13, 1
    %s19 = ssub.s32 %s13, 2
    %s26 = sadd.s32 1, %s21
    %p27 = scmp.ge.s32.totalorder %s26, 1
    %s28 = scalar_select %p27, 0, %s26
    %s29 = sadd.s32 1, %s20
    %s30 = scalar_select %p27, %s29, %s20
    %p31 = scmp.ge.s32.totalorder %s30, 2
    %s32 = scalar_select %p31, 0, %s30
    %s33 = ssub.s32 %s20, %s32
    %s34 = ssub.s32 %s21, %s28
    %s35 = sor.u32 %s33, %s34
    %p36 = scmp.eq.s32.totalorder %s35, 0
    %s38 = sadd.s32 %s37, 1
    %s39 = scalar_select %p36, %s37, %s38
    %p42 = pneg %p36
    %p43 = scmp.eq.s32.totalorder %s13, 1
    %p44 = por %p42, %p43
    %p45 = scmp.ne.s32.totalorder %s37, %s40
    %p46 = scmp.eq.s32.totalorder %s13, 0
    %p47 = por %p45, %p46
    %p48 = scmp.ne.s32.totalorder %s37, %s40
    %p49 = scmp.eq.s32.totalorder %s18, 1
    %p50 = por %p48, %p49
    %p51 = scmp.ne.s32.totalorder %s40, %s41
    %p52 = scmp.eq.s32.totalorder %s18, 0
    %p53 = por %p51, %p52
    %p54 = scmp.ne.s32.totalorder %s40, %s41
    %p55 = scmp.eq.s32.totalorder %s19, 1
    %p56 = por %p54, %p55
    %p58 = scmp.ne.s32.totalorder %s41, %s57
    %p59 = scmp.eq.s32.totalorder %s19, 0
    %p60 = por %p58, %p59
    %s62 = sadd.s32 %s61, 1
    %p65 = scmp.eq.s32.totalorder %s13, 1
    %p66 = scmp.ne.s32.totalorder %s61, %s63
    %p67 = scmp.eq.s32.totalorder %s13, 0
    %p68 = por %p66, %p67
    %p69 = scmp.ne.s32.totalorder %s61, %s63
    %p70 = scmp.eq.s32.totalorder %s18, 1
    %p71 = por %p69, %p70
    %p72 = scmp.ne.s32.totalorder %s63, %s64
    %p73 = scmp.eq.s32.totalorder %s18, 0
    %p74 = por %p72, %p73
    %p75 = scmp.ne.s32.totalorder %s63, %s64
    %p76 = scmp.eq.s32.totalorder %s19, 1
    %p77 = por %p75, %p76
    %p79 = scmp.ne.s32.totalorder %s64, %s78
    %p80 = scmp.eq.s32.totalorder %s19, 0
    %p81 = por %p79, %p80
    %s83 = sadd.s32 %s82, 1
    %p86 = scmp.eq.s32.totalorder %s13, 1
    %p87 = scmp.ne.s32.totalorder %s82, %s84
    %p88 = scmp.eq.s32.totalorder %s13, 0
    %p89 = por %p87, %p88
    %p90 = scmp.ne.s32.totalorder %s82, %s84
    %p91 = scmp.eq.s32.totalorder %s18, 1
    %p92 = por %p90, %p91
    %p93 = scmp.ne.s32.totalorder %s84, %s85
    %p94 = scmp.eq.s32.totalorder %s18, 0
    %p95 = por %p93, %p94
    %p96 = scmp.ne.s32.totalorder %s84, %s85
    %p97 = scmp.eq.s32.totalorder %s19, 1
    %p98 = por %p96, %p97
    %p100 = scmp.ne.s32.totalorder %s85, %s99
    %p101 = scmp.eq.s32.totalorder %s19, 0
    %p102 = por %p100, %p101
    %s104 = sadd.s32 %s103, 1
    %p107 = scmp.eq.s32.totalorder %s13, 1
    %p108 = scmp.ne.s32.totalorder %s103, %s105
    %p109 = scmp.eq.s32.totalorder %s13, 0
    %p110 = por %p108, %p109
    %p111 = scmp.ne.s32.totalorder %s103, %s105
    %p112 = scmp.eq.s32.totalorder %s18, 1
    %p113 = por %p111, %p112
    %p114 = scmp.ne.s32.totalorder %s105, %s106
    %p115 = scmp.eq.s32.totalorder %s18, 0
    %p116 = por %p114, %p115
    %p117 = scmp.ne.s32.totalorder %s105, %s106
    %p118 = scmp.eq.s32.totalorder %s19, 1
    %p119 = por %p117, %p118
    %p121 = scmp.ne.s32.totalorder %s106, %s120
    %p122 = scmp.eq.s32.totalorder %s19, 0
    %p123 = por %p121, %p122
    %s124 = ssub.s32 %s20, %s32
    %s125 = ssub.s32 %s21, %s28
    %s126 = sor.u32 %s124, %s125
    %p127 = scmp.eq.s32.totalorder %s126, 0
    %s129 = sadd.s32 %s128, 1
    %s130 = scalar_select %p127, %s128, %s129
    %p133 = pneg %p127
    %p134 = scmp.eq.s32.totalorder %s13, 1
    %p135 = por %p133, %p134
    %p136 = scmp.ne.s32.totalorder %s128, %s131
    %p137 = scmp.eq.s32.totalorder %s13, 0
    %p138 = por %p136, %p137
    %p139 = scmp.ne.s32.totalorder %s128, %s131
    %p140 = scmp.eq.s32.totalorder %s18, 1
    %p141 = por %p139, %p140
    %p142 = scmp.ne.s32.totalorder %s131, %s132
    %p143 = scmp.eq.s32.totalorder %s18, 0
    %p144 = por %p142, %p143
    %p145 = scmp.ne.s32.totalorder %s131, %s132
    %p146 = scmp.eq.s32.totalorder %s19, 1
    %p147 = por %p145, %p146
    %p149 = scmp.ne.s32.totalorder %s132, %s148
    %p150 = scmp.eq.s32.totalorder %s19, 0
    %p151 = por %p149, %p150
    %s152 = ssub.s32 %s20, %s32
    %s153 = ssub.s32 %s21, %s28
    %s154 = sor.u32 %s152, %s153
    %p155 = scmp.eq.s32.totalorder %s154, 0
    %s157 = sadd.s32 %s156, 1
    %s158 = scalar_select %p155, %s156, %s157
    %p161 = pneg %p155
    %p162 = scmp.eq.s32.totalorder %s13, 1
    %p163 = por %p161, %p162
    %p164 = scmp.ne.s32.totalorder %s156, %s159
    %p165 = scmp.eq.s32.totalorder %s13, 0
    %p166 = por %p164, %p165
    %p167 = scmp.ne.s32.totalorder %s156, %s159
    %p168 = scmp.eq.s32.totalorder %s18, 1
    %p169 = por %p167, %p168
    %p170 = scmp.ne.s32.totalorder %s159, %s160
    %p171 = scmp.eq.s32.totalorder %s18, 0
    %p172 = por %p170, %p171
    %p173 = scmp.ne.s32.totalorder %s159, %s160
    %p174 = scmp.eq.s32.totalorder %s19, 1
    %p175 = por %p173, %p174
    %p177 = scmp.ne.s32.totalorder %s160, %s176
    %p178 = scmp.eq.s32.totalorder %s19, 0
    %p179 = por %p177, %p178
    %s180 = ssub.s32 %s20, %s32
    %s181 = ssub.s32 %s21, %s28
    %s182 = sor.u32 %s180, %s181
    %p183 = scmp.eq.s32.totalorder %s182, 0
    %s185 = sadd.s32 %s184, 1
    %s186 = scalar_select %p183, %s184, %s185
    %p189 = pneg %p183
    %p190 = scmp.eq.s32.totalorder %s13, 1
    %p191 = por %p189, %p190
    %p192 = scmp.ne.s32.totalorder %s184, %s187
    %p193 = scmp.eq.s32.totalorder %s13, 0
    %p194 = por %p192, %p193
    %p195 = scmp.ne.s32.totalorder %s184, %s187
    %p196 = scmp.eq.s32.totalorder %s18, 1
    %p197 = por %p195, %p196
    %p198 = scmp.ne.s32.totalorder %s187, %s188
    %p199 = scmp.eq.s32.totalorder %s18, 0
    %p200 = por %p198, %p199
    %p201 = scmp.ne.s32.totalorder %s187, %s188
    %p202 = scmp.eq.s32.totalorder %s19, 1
    %p203 = por %p201, %p202
    %p205 = scmp.ne.s32.totalorder %s188, %s204
    %p206 = scmp.eq.s32.totalorder %s19, 0
    %p207 = por %p205, %p206
    %p208 = scmp.le.s32.totalorder 1, %s13
    %p209 = scmp.lt.s32.totalorder %s13, 3
    %p210 = pnand %p208, %p209
    %p211 = pneg %p210
    // Predicated region
    $region9: #{double_conv.3} parent=5 // pred_check
      _
    $region10: #{double_conv.3} parent=5 // pred_check_branch
      %213 = sbr.rel (%p210) target = $region12
    $region11: #{double_conv.3} parent=5 // pred_region
      %s214 = ssub.s32 %s13, 1
      // Predicated region
      $region13: #{double_conv.3} parent=11 // pred_check
        %p215 = pneg %p74
      $region14: #{double_conv.3} parent=11 // pred_check_branch
        %217 = sbr.rel (%p215) target = $region16
      $region15: #{double_conv.3} parent=11 // pred_region
        _
      $region16: #{double_conv.3} parent=11 // pred_fallthru
        _
      // Predicated region
      $region17: #{double_conv.3} parent=11 // pred_check
        %p218 = pneg %p95
      $region18: #{double_conv.3} parent=11 // pred_check_branch
        %220 = sbr.rel (%p218) target = $region20
      $region19: #{double_conv.3} parent=11 // pred_region
        _
      $region20: #{double_conv.3} parent=11 // pred_fallthru
        _
      // Predicated region
      $region21: #{double_conv.3} parent=11 // pred_check
        %p221 = pneg %p116
      $region22: #{double_conv.3} parent=11 // pred_check_branch
        %223 = sbr.rel (%p221) target = $region24
      $region23: #{double_conv.3} parent=11 // pred_region
        _
      $region24: #{double_conv.3} parent=11 // pred_fallthru
        _
    $region12: #{double_conv.3} parent=5 // pred_fallthru
      _
    %p224 = scmp.lt.s32.totalorder %s13, 2
    // Predicated region
    $region25: #{double_conv.3} parent=5 // pred_check
      %p225 = pneg %p224
    $region26: #{double_conv.3} parent=5 // pred_check_branch
      %227 = sbr.rel (%p225) target = $region28
    $region27: #{double_conv.3} parent=5 // pred_region
      // Predicated region
      $region29: #{double_conv.3} parent=27 // pred_check
        %p228 = pneg %p47
      $region30: #{double_conv.3} parent=27 // pred_check_branch
        %230 = sbr.rel (%p228) target = $region32
      $region31: #{double_conv.3} parent=27 // pred_region
        %p231 = scmp.lt.s32.totalorder %s20, 1
        %s232 = scalar_select %p231, %s20, 1
        %p233 = scmp.lt.s32.totalorder %s21, 0
        %s234 = scalar_select %p233, %s21, 0
        %s235 = smul.addr %s234, 3
        %s236 = smul.addr %s232, 3
        %s237 = sadd.s32 %s235, %s236
        %s238 = smul.addr %s237, 8
        %s239 = scalar_lea.vmem %s0, %s238
      $region32: #{double_conv.3} parent=27 // pred_fallthru
        _
    $region28: #{double_conv.3} parent=5 // pred_fallthru
      _
    %p240 = scmp.le.s32.totalorder 1, %s13
    %p241 = scmp.lt.s32.totalorder %s13, 3
    %p242 = pnand %p240, %p241
    %p243 = pneg %p242
    // Predicated region
    $region33: #{double_conv.3} parent=5 // pred_check
      _
    $region34: #{double_conv.3} parent=5 // pred_check_branch
      %245 = sbr.rel (%p242) target = $region36
    $region35: #{double_conv.3} parent=5 // pred_region
      %s246 = ssub.s32 %s13, 1
      %p247 = scmp.lt.s32.totalorder %s22, 1
      %s248 = scalar_select %p247, %s22, 1
      %p249 = scmp.lt.s32.totalorder %s23, 0
      %s250 = scalar_select %p249, %s23, 0
      %s251 = smul.addr %s250, 3
      %s252 = smul.addr %s248, 3
      %s253 = sadd.s32 %s251, %s252
      %s254 = smul.addr %s253, 8
      %s255 = scalar_lea.vmem %s0, %s254
      %p256 = pneg %p53
      %p257 = pneg %p50
      %p258 = pneg %p74
      %p259 = pneg %p71
      %p260 = pneg %p95
      %p261 = pneg %p92
      %p262 = pneg %p116
      %p263 = pneg %p113
      %p264 = pneg %p144
      %p265 = pneg %p141
      %s266 = smul.u32 2, %s23
      %p267 = scmp.lt.s32.totalorder %s22, 1
      %s268 = scalar_select %p267, %s22, 1
      %p269 = scmp.lt.s32.totalorder %s266, 1
      %s270 = scalar_select %p269, %s266, 1
      %s271 = smul.addr %s268, 2
      %s272 = sadd.s32 %s270, %s271
      %s273 = smul.addr %s272, 8
      %s274 = scalar_lea.vmem %s4, %s273
      %p275 = pneg %p172
      %p276 = pneg %p169
      %p277 = scmp.lt.s32.totalorder %s22, 1
      %s278 = scalar_select %p277, %s22, 1
      %p279 = scmp.lt.s32.totalorder %s23, 0
      %s280 = scalar_select %p279, %s23, 0
      %s281 = sadd.s32 %s280, %s278
      %s282 = scalar_lea.vmem %s5, %s281
      %p283 = pneg %p200
      %p284 = pneg %p197
      %p285 = scmp.lt.s32.totalorder %s22, 1
      %s286 = scalar_select %p285, %s22, 1
      %p287 = scmp.lt.s32.totalorder %s23, 0
      %s288 = scalar_select %p287, %s23, 0
      %s289 = sadd.s32 %s288, %s286
      %s290 = scalar_lea.vmem %s6, %s289
      %p291 = scmp.lt.s32.totalorder %s22, 1
      %s292 = scalar_select %p291, %s22, 1
      %p293 = scmp.lt.s32.totalorder %s23, 0
      %s294 = scalar_select %p293, %s23, 0
      %s295 = smul.addr %s294, 3
      %s296 = smul.addr %s292, 3
      %s297 = sadd.s32 %s295, %s296
      %s298 = smul.addr %s297, 8
      %s299 = scalar_lea.vmem %s0, %s298
      %s300 = smul.u32 2, %s23
      %p301 = scmp.lt.s32.totalorder %s22, 1
      %s302 = scalar_select %p301, %s22, 1
      %p303 = scmp.lt.s32.totalorder %s300, 1
      %s304 = scalar_select %p303, %s300, 1
      %s305 = smul.addr %s302, 2
      %s306 = sadd.s32 %s304, %s305
      %s307 = smul.addr %s306, 8
      %s308 = scalar_lea.vmem %s4, %s307
      %s309 = smul.u32 2, %s23
      %p310 = scmp.lt.s32.totalorder %s22, 1
      %s311 = scalar_select %p310, %s22, 1
      %p312 = scmp.lt.s32.totalorder %s23, 0
      %s313 = scalar_select %p312, %s23, 0
      %s314 = sadd.s32 %s313, %s311
      %s315 = scalar_lea.vmem %s5, %s314
      %p316 = scmp.lt.s32.totalorder %s22, 1
      %s317 = scalar_select %p316, %s22, 1
      %p318 = scmp.lt.s32.totalorder %s23, 0
      %s319 = scalar_select %p318, %s23, 0
      %s320 = sadd.s32 %s319, %s317
      %s321 = scalar_lea.vmem %s6, %s320
      %v322 = vld [vmem:[%s299] sm:$0xff]
      %v323 = vld [vmem:[%s299 + $0x8] sm:$0xff]
      %v324 = vld [vmem:[%s299 + $0x10] sm:$0x3]
      %v325 = vld [vmem:[%s2] sm:$0x1]
      %v327 = vperm.slane %v325, 0
      %v329 = vmul.f32 %v322, %v327
      %v330 = vmul.f32 %v323, %v327
      %v331 = vmul.f32 %v324, %v327
      %v332 = vld [vmem:[%s3] sm:$0x1]
      %v334 = vperm.slane %v332, 0
      %v336 = vadd.f32 %v329, %v334
      %v337 = vadd.f32 %v330, %v334
      %v338 = vadd.f32 %v331, %v334
      %v339 = vmax.f32 %v336, 0.0
      %v340 = vmax.f32 %v337, 0.0
      %v341 = vmax.f32 %v338, 0.0
      %v342 = vlaneseq
      %v343 = vshrl.u32 %v342, 7
      %v344 = vadd.s32 %v343, 8
      %v345 = vadd.s32 %v343, 16
      %p346 = scmp.gt.s32.totalorder %s23, 0
      %vm347 = vcmp.gt.s32.totalorder %v343, 0
      %vm348 = vcmp.gt.s32.totalorder %v344, 0
      %vm349 = vcmp.gt.s32.totalorder %v345, 0
      %s350 = scalar_select %p346, 1, 0
      %v351 = vstv %s350
      %vm352 = vcmp.eq.s32.totalorder %v351, 1
      %vm353 = vmor %vm352, %vm347
      %vm354 = vmor %vm352, %vm348
      %vm355 = vmor %vm352, %vm349
      %p356 = scmp.lt.s32.totalorder %s23, 0
      %vm357 = vcmp.lt.s32.totalorder %v343, 17
      %vm358 = vcmp.lt.s32.totalorder %v344, 17
      %vm359 = vcmp.lt.s32.totalorder %v345, 17
      %s360 = scalar_select %p356, 1, 0
      %v361 = vstv %s360
      %vm362 = vcmp.eq.s32.totalorder %v361, 1
      %vm363 = vmor %vm362, %vm357
      %vm364 = vmor %vm362, %vm358
      %vm365 = vmor %vm362, %vm359
      %vm366 = vmand %vm353, %vm363
      %vm367 = vmand %vm354, %vm364
      %vm368 = vmand %vm355, %vm365
      %v369 = vsel %vm366, %v339, 0.0
      %v370 = vsel %vm367, %v340, 0.0
      %v371 = vsel %vm368, %v341, 0.0
      %372 = vst [vmem:[#allocation2] sm:$0xff] %v369
      %373 = vst [vmem:[#allocation2 + $0x8] sm:$0xff] %v370
      %374 = vst [vmem:[#allocation2 + $0x10] sm:$0x3] %v371
      %v375 = vld [vmem:[#allocation2] sm:$0xff]
      %v376 = vld [vmem:[#allocation2 + $0x8] sm:$0xff]
      %v377 = vld [vmem:[%s1] sm:$0xff]
      %v378 = vld [vmem:[%s1 + $0x8] sm:$0xff]
      %v379 = vld [vmem:[%s1 + $0x10] sm:$0xff]
      %v380 = vld [vmem:[%s1 + $0x18] sm:$0xff]
      %v381 = vld [vmem:[%s1 + $0x20] sm:$0xff]
      %v382 = vld [vmem:[%s1 + $0x28] sm:$0xff]
      %v383 = vld [vmem:[%s1 + $0x30] sm:$0xff]
      %v384 = vld [vmem:[%s1 + $0x38] sm:$0xff]
      %v385 = vld [vmem:[%s1 + $0x40] sm:$0xff]
      %v386 = vld [vmem:[%s1 + $0x48] sm:$0xff]
      %v387 = vld [vmem:[%s1 + $0x50] sm:$0xff]
      %v388 = vld [vmem:[%s1 + $0x58] sm:$0xff]
      %v389 = vld [vmem:[%s1 + $0x60] sm:$0xff]
      %v390 = vld [vmem:[%s1 + $0x68] sm:$0xff]
      %v391 = vld [vmem:[%s1 + $0x70] sm:$0xff]
      %v392 = vld [vmem:[%s1 + $0x78] sm:$0xff]
      %v393 = vld [vmem:[#allocation2 + $0x1] sm:$0xff]
      %v394 = vld [vmem:[#allocation2 + $0x9] sm:$0xff]
      %s395 = scalar_lea.vmem %s1, 128
      %v396 = vld [vmem:[%s395] sm:$0xff]
      %v397 = vld [vmem:[%s395 + $0x8] sm:$0xff]
      %v398 = vld [vmem:[%s395 + $0x10] sm:$0xff]
      %v399 = vld [vmem:[%s395 + $0x18] sm:$0xff]
      %v400 = vld [vmem:[%s395 + $0x20] sm:$0xff]
      %v401 = vld [vmem:[%s395 + $0x28] sm:$0xff]
      %v402 = vld [vmem:[%s395 + $0x30] sm:$0xff]
      %v403 = vld [vmem:[%s395 + $0x38] sm:$0xff]
      %v404 = vld [vmem:[%s395 + $0x40] sm:$0xff]
      %v405 = vld [vmem:[%s395 + $0x48] sm:$0xff]
      %v406 = vld [vmem:[%s395 + $0x50] sm:$0xff]
      %v407 = vld [vmem:[%s395 + $0x58] sm:$0xff]
      %v408 = vld [vmem:[%s395 + $0x60] sm:$0xff]
      %v409 = vld [vmem:[%s395 + $0x68] sm:$0xff]
      %v410 = vld [vmem:[%s395 + $0x70] sm:$0xff]
      %v411 = vld [vmem:[%s395 + $0x78] sm:$0xff]
      %412 = vmatpush.msra.mxu0 %v411
      %413 = vmatpush.msra.mxu0 %v410
      %414 = vmatpush.msra.mxu0 %v409
      %415 = vmatpush.msra.mxu0 %v408
      %416 = vmatpush.msra.mxu0 %v407
      %417 = vmatpush.msra.mxu0 %v406
      %418 = vmatpush.msra.mxu0 %v405
      %419 = vmatpush.msra.mxu0 %v404
      %420 = vmatpush.msra.mxu0 %v403
      %421 = vmatpush.msra.mxu0 %v402
      %422 = vmatpush.msra.mxu0 %v401
      %423 = vmatpush.msra.mxu0 %v400
      %424 = vmatpush.msra.mxu0 %v399
      %425 = vmatpush.msra.mxu0 %v398
      %426 = vmatpush.msra.mxu0 %v397
      %427 = vmatpush.msra.mxu0 %v396
      %428 = vmatmul.f32.gmra.mxu0 %v393
      %v429 = vpop.f32.mrf.mxu0
      %v430 = vadd.f32 0.0, %v429
      %431 = vmatmul.f32.gmra.mxu0 %v394
      %v432 = vpop.f32.mrf.mxu0
      %v433 = vadd.f32 0.0, %v432
      %434 = vdwg.mxu0
      %435 = vmatpush.msra.mxu0 %v392
      %436 = vmatpush.msra.mxu0 %v391
      %437 = vmatpush.msra.mxu0 %v390
      %438 = vmatpush.msra.mxu0 %v389
      %439 = vmatpush.msra.mxu0 %v388
      %440 = vmatpush.msra.mxu0 %v387
      %441 = vmatpush.msra.mxu0 %v386
      %442 = vmatpush.msra.mxu0 %v385
      %443 = vmatpush.msra.mxu0 %v384
      %444 = vmatpush.msra.mxu0 %v383
      %445 = vmatpush.msra.mxu0 %v382
      %446 = vmatpush.msra.mxu0 %v381
      %447 = vmatpush.msra.mxu0 %v380
      %448 = vmatpush.msra.mxu0 %v379
      %449 = vmatpush.msra.mxu0 %v378
      %450 = vmatpush.msra.mxu0 %v377
      %451 = vmatmul.f32.gmra.mxu0 %v375
      %v452 = vpop.f32.mrf.mxu0
      %v453 = vadd.f32 %v430, %v452
      %454 = vmatmul.f32.gmra.mxu0 %v376
      %v455 = vpop.f32.mrf.mxu0
      %v456 = vadd.f32 %v433, %v455
      %457 = vdwg.mxu0
      %v458 = vld [vmem:[#allocation2 + $0x2] sm:$0xff]
      %v459 = vld [vmem:[#allocation2 + $0xa] sm:$0xff]
      %s460 = scalar_lea.vmem %s1, 256
      %v461 = vld [vmem:[%s460] sm:$0xff]
      %v462 = vld [vmem:[%s460 + $0x8] sm:$0xff]
      %v463 = vld [vmem:[%s460 + $0x10] sm:$0xff]
      %v464 = vld [vmem:[%s460 + $0x18] sm:$0xff]
      %v465 = vld [vmem:[%s460 + $0x20] sm:$0xff]
      %v466 = vld [vmem:[%s460 + $0x28] sm:$0xff]
      %v467 = vld [vmem:[%s460 + $0x30] sm:$0xff]
      %v468 = vld [vmem:[%s460 + $0x38] sm:$0xff]
      %v469 = vld [vmem:[%s460 + $0x40] sm:$0xff]
      %v470 = vld [vmem:[%s460 + $0x48] sm:$0xff]
      %v471 = vld [vmem:[%s460 + $0x50] sm:$0xff]
      %v472 = vld [vmem:[%s460 + $0x58] sm:$0xff]
      %v473 = vld [vmem:[%s460 + $0x60] sm:$0xff]
      %v474 = vld [vmem:[%s460 + $0x68] sm:$0xff]
      %v475 = vld [vmem:[%s460 + $0x70] sm:$0xff]
      %v476 = vld [vmem:[%s460 + $0x78] sm:$0xff]
      %477 = vmatpush.msra.mxu0 %v476
      %478 = vmatpush.msra.mxu0 %v475
      %479 = vmatpush.msra.mxu0 %v474
      %480 = vmatpush.msra.mxu0 %v473
      %481 = vmatpush.msra.mxu0 %v472
      %482 = vmatpush.msra.mxu0 %v471
      %483 = vmatpush.msra.mxu0 %v470
      %484 = vmatpush.msra.mxu0 %v469
      %485 = vmatpush.msra.mxu0 %v468
      %486 = vmatpush.msra.mxu0 %v467
      %487 = vmatpush.msra.mxu0 %v466
      %488 = vmatpush.msra.mxu0 %v465
      %489 = vmatpush.msra.mxu0 %v464
      %490 = vmatpush.msra.mxu0 %v463
      %491 = vmatpush.msra.mxu0 %v462
      %492 = vmatpush.msra.mxu0 %v461
      %493 = vmatmul.f32.gmra.mxu0 %v458
      %v494 = vpop.f32.mrf.mxu0
      %v495 = vadd.f32 0.0, %v494
      %496 = vmatmul.f32.gmra.mxu0 %v459
      %v497 = vpop.f32.mrf.mxu0
      %v498 = vadd.f32 0.0, %v497
      %499 = vdwg.mxu0
      %v500 = vadd.f32 %v453, %v495
      %v501 = vadd.f32 %v456, %v498
      %502 = vst [vmem:[%s308] sm:$0xff] %v500
      %503 = vst [vmem:[%s308 + $0x8] sm:$0xff] %v501
      %v504 = vadd.f32 %v500, %v501
      %v505 = vrot.slane %v504, 4
      %v506 = vadd.f32 %v504, %v505
      %v507 = vrot.slane %v506, 2
      %v508 = vadd.f32 %v506, %v507
      %v509 = vrot.slane %v508, 1
      %v510 = vadd.f32 %v508, %v509
      %511 = vst [vmem:[%s315] sm:$0x1] %v510
      %v512 = vmul.f32 %v500, %v500
      %v513 = vmul.f32 %v501, %v501
      %v514 = vadd.f32 %v512, %v513
      %v515 = vrot.slane %v514, 4
      %v516 = vadd.f32 %v514, %v515
      %v517 = vrot.slane %v516, 2
      %v518 = vadd.f32 %v516, %v517
      %v519 = vrot.slane %v518, 1
      %v520 = vadd.f32 %v518, %v519
      %521 = vst [vmem:[%s321] sm:$0x1] %v520
      %s522 = smul.u32 2, %s23
      %p523 = scmp.lt.s32.totalorder %s22, 1
      %s524 = scalar_select %p523, %s22, 1
      %p525 = scmp.lt.s32.totalorder %s522, 1
      %s526 = scalar_select %p525, %s522, 1
      %s527 = smul.addr %s524, 2
      %s528 = sadd.s32 %s526, %s527
      %s529 = smul.addr %s528, 8
      %s530 = scalar_lea.vmem %s4, %s529
      %p531 = scmp.lt.s32.totalorder %s22, 1
      %s532 = scalar_select %p531, %s22, 1
      %p533 = scmp.lt.s32.totalorder %s23, 0
      %s534 = scalar_select %p533, %s23, 0
      %s535 = sadd.s32 %s534, %s532
      %s536 = scalar_lea.vmem %s5, %s535
      %p537 = scmp.lt.s32.totalorder %s22, 1
      %s538 = scalar_select %p537, %s22, 1
      %p539 = scmp.lt.s32.totalorder %s23, 0
      %s540 = scalar_select %p539, %s23, 0
      %s541 = sadd.s32 %s540, %s538
      %s542 = scalar_lea.vmem %s6, %s541
      // Predicated region
      $region37: #{double_conv.3} parent=35 // pred_check
        %p543 = pneg %p141
      $region38: #{double_conv.3} parent=35 // pred_check_branch
        %545 = sbr.rel (%p543) target = $region40
      $region39: #{double_conv.3} parent=35 // pred_region
        %s546 = smul.u32 2, %s23
      $region40: #{double_conv.3} parent=35 // pred_fallthru
        _
      // Predicated region
      $region41: #{double_conv.3} parent=35 // pred_check
        %p547 = pneg %p169
      $region42: #{double_conv.3} parent=35 // pred_check_branch
        %549 = sbr.rel (%p547) target = $region44
      $region43: #{double_conv.3} parent=35 // pred_region
        _
      $region44: #{double_conv.3} parent=35 // pred_fallthru
        _
      // Predicated region
      $region45: #{double_conv.3} parent=35 // pred_check
        %p550 = pneg %p197
      $region46: #{double_conv.3} parent=35 // pred_check_branch
        %552 = sbr.rel (%p550) target = $region48
      $region47: #{double_conv.3} parent=35 // pred_region
        _
      $region48: #{double_conv.3} parent=35 // pred_fallthru
        _
    $region36: #{double_conv.3} parent=5 // pred_fallthru
      _
    %p553 = scmp.le.s32.totalorder 2, %s13
    // Predicated region
    $region49: #{double_conv.3} parent=5 // pred_check
      %p554 = pneg %p553
    $region50: #{double_conv.3} parent=5 // pred_check_branch
      %556 = sbr.rel (%p554) target = $region52
    $region51: #{double_conv.3} parent=5 // pred_region
      %s557 = ssub.s32 %s13, 2
      // Predicated region
      $region53: #{double_conv.3} parent=51 // pred_check
        %p558 = pneg %p147
      $region54: #{double_conv.3} parent=51 // pred_check_branch
        %560 = sbr.rel (%p558) target = $region56
      $region55: #{double_conv.3} parent=51 // pred_region
        %s561 = smul.u32 2, %s25
        %p562 = scmp.lt.s32.totalorder %s24, 1
        %s563 = scalar_select %p562, %s24, 1
        %p564 = scmp.lt.s32.totalorder %s561, 1
        %s565 = scalar_select %p564, %s561, 1
        %s566 = smul.addr %s563, 2
        %s567 = sadd.s32 %s565, %s566
        %s568 = smul.addr %s567, 8
        %s569 = scalar_lea.vmem %s4, %s568
      $region56: #{double_conv.3} parent=51 // pred_fallthru
        _
      // Predicated region
      $region57: #{double_conv.3} parent=51 // pred_check
        %p570 = pneg %p175
      $region58: #{double_conv.3} parent=51 // pred_check_branch
        %572 = sbr.rel (%p570) target = $region60
      $region59: #{double_conv.3} parent=51 // pred_region
        %p573 = scmp.lt.s32.totalorder %s24, 1
        %s574 = scalar_select %p573, %s24, 1
        %p575 = scmp.lt.s32.totalorder %s25, 0
        %s576 = scalar_select %p575, %s25, 0
        %s577 = sadd.s32 %s576, %s574
        %s578 = scalar_lea.vmem %s5, %s577
      $region60: #{double_conv.3} parent=51 // pred_fallthru
        _
      // Predicated region
      $region61: #{double_conv.3} parent=51 // pred_check
        %p579 = pneg %p203
      $region62: #{double_conv.3} parent=51 // pred_check_branch
        %581 = sbr.rel (%p579) target = $region64
      $region63: #{double_conv.3} parent=51 // pred_region
        %p582 = scmp.lt.s32.totalorder %s24, 1
        %s583 = scalar_select %p582, %s24, 1
        %p584 = scmp.lt.s32.totalorder %s25, 0
        %s585 = scalar_select %p584, %s25, 0
        %s586 = sadd.s32 %s585, %s583
        %s587 = scalar_lea.vmem %s6, %s586
      $region64: #{double_conv.3} parent=51 // pred_fallthru
        _
    $region52: #{double_conv.3} parent=5 // pred_fallthru
      _
  $region6: #{double_conv.3} parent=0 // loop_footer
    %s17 = sadd.s32 1, %s13
  $region7: #{double_conv.3} parent=0 // loop_footer_branch
    %12 = sbr.rel target = $region3
  $region8: #{double_conv.3} parent=0 // loop_exit
    _

// kernel: double_conv.2
$region0: #{double_conv.2}
  #allocation0 [shape = 'u32[]', space=smem, size = 0x4, offset = 0x4, fixed_abs, tag = 'smem constant byte address 0x4 - core index']
  #allocation1 [shape = 'u32[72,128]{1,0:T(1,128)}', space=vmem, size = 0x9000, scoped, tag = 'internal scratch']
  %s0 = inlined_call_operand.vmem [shape: f32[2,1,20,64], index: 0, kind: input, shape index: {}]
  %s1 = inlined_call_operand.vmem [shape: f32[3,64,128], index: 1, kind: input, shape index: {}]
  %s2 = inlined_call_operand.vmem [shape: f32[2,1,18,128], index: 2, kind: output, shape index: {0}]
  %s3 = inlined_call_operand.vmem [shape: f32[2,1,1,128], index: 3, kind: output, shape index: {1}]
  %s4 = inlined_call_operand.vmem [shape: f32[2,1,1,128], index: 4, kind: output, shape index: {2}]
  %5 = xla_tuple %s2, %s3, %s4
  %s6 = sld [smem:[#allocation0]]
  $region57: #{double_conv.2} parent=0
    _
  %s8 = ssub.s32 1, %s6
  %s9 = scalar_select 0, %s8, %s6
  loop: start=0, step=1, limit=4
  $region2: #{double_conv.2} parent=0 // loop_pre_header
    _
  $region3: #{double_conv.2} parent=0 // loop_header
    %s11 = sphi 0, %s15
    %p12 = scmp.ge.s32.totalorder %s11, 4
    %s18 = sphi 0, %s30
    %s19 = sphi 0, %s26
    %s20 = sphi 0, %s18
    %s21 = sphi 0, %s19
    %s22 = sphi 0, %s20
    %s23 = sphi 0, %s21
    %s35 = sphi 0, %s37
    %s38 = sphi 0, %s35
    %s39 = sphi 0, %s38
    %s55 = sphi 0, %s39
    %s59 = sphi 0, %s59
    %s61 = sphi 0, %s59
    %s62 = sphi 0, %s61
    %s76 = sphi 0, %s62
    %s84 = sphi 0, %s86
    %s87 = sphi 0, %s84
    %s88 = sphi 0, %s87
    %s104 = sphi 0, %s88
    %s112 = sphi 0, %s114
    %s115 = sphi 0, %s112
    %s116 = sphi 0, %s115
    %s132 = sphi 0, %s116
    %s140 = sphi 0, %s142
    %s143 = sphi 0, %s140
    %s144 = sphi 0, %s143
    %s160 = sphi 0, %s144
  $region4: #{double_conv.2} parent=0 // loop_header_branch
    %14 = sbr.rel (%p12) target = $region8
  $region5: #{double_conv.2} parent=0 // loop_body
    %s16 = ssub.s32 %s11, 1
    %s17 = ssub.s32 %s11, 2
    %s24 = sadd.s32 1, %s19
    %p25 = scmp.ge.s32.totalorder %s24, 1
    %s26 = scalar_select %p25, 0, %s24
    %s27 = sadd.s32 1, %s18
    %s28 = scalar_select %p25, %s27, %s18
    %p29 = scmp.ge.s32.totalorder %s28, 2
    %s30 = scalar_select %p29, 0, %s28
    %s31 = ssub.s32 %s18, %s30
    %s32 = ssub.s32 %s19, %s26
    %s33 = sor.u32 %s31, %s32
    %p34 = scmp.eq.s32.totalorder %s33, 0
    %s36 = sadd.s32 %s35, 1
    %s37 = scalar_select %p34, %s35, %s36
    %p40 = pneg %p34
    %p41 = scmp.eq.s32.totalorder %s11, 1
    %p42 = por %p40, %p41
    %p43 = scmp.ne.s32.totalorder %s35, %s38
    %p44 = scmp.eq.s32.totalorder %s11, 0
    %p45 = por %p43, %p44
    %p46 = scmp.ne.s32.totalorder %s35, %s38
    %p47 = scmp.eq.s32.totalorder %s16, 1
    %p48 = por %p46, %p47
    %p49 = scmp.ne.s32.totalorder %s38, %s39
    %p50 = scmp.eq.s32.totalorder %s16, 0
    %p51 = por %p49, %p50
    %p52 = scmp.ne.s32.totalorder %s38, %s39
    %p53 = scmp.eq.s32.totalorder %s17, 1
    %p54 = por %p52, %p53
    %p56 = scmp.ne.s32.totalorder %s39, %s55
    %p57 = scmp.eq.s32.totalorder %s17, 0
    %p58 = por %p56, %p57
    %s60 = sadd.s32 %s59, 1
    %p63 = scmp.eq.s32.totalorder %s11, 1
    %p64 = scmp.ne.s32.totalorder %s59, %s61
    %p65 = scmp.eq.s32.totalorder %s11, 0
    %p66 = por %p64, %p65
    %p67 = scmp.ne.s32.totalorder %s59, %s61
    %p68 = scmp.eq.s32.totalorder %s16, 1
    %p69 = por %p67, %p68
    %p70 = scmp.ne.s32.totalorder %s61, %s62
    %p71 = scmp.eq.s32.totalorder %s16, 0
    %p72 = por %p70, %p71
    %p73 = scmp.ne.s32.totalorder %s61, %s62
    %p74 = scmp.eq.s32.totalorder %s17, 1
    %p75 = por %p73, %p74
    %p77 = scmp.ne.s32.totalorder %s62, %s76
    %p78 = scmp.eq.s32.totalorder %s17, 0
    %p79 = por %p77, %p78
    %s80 = ssub.s32 %s18, %s30
    %s81 = ssub.s32 %s19, %s26
    %s82 = sor.u32 %s80, %s81
    %p83 = scmp.eq.s32.totalorder %s82, 0
    %s85 = sadd.s32 %s84, 1
    %s86 = scalar_select %p83, %s84, %s85
    %p89 = pneg %p83
    %p90 = scmp.eq.s32.totalorder %s11, 1
    %p91 = por %p89, %p90
    %p92 = scmp.ne.s32.totalorder %s84, %s87
    %p93 = scmp.eq.s32.totalorder %s11, 0
    %p94 = por %p92, %p93
    %p95 = scmp.ne.s32.totalorder %s84, %s87
    %p96 = scmp.eq.s32.totalorder %s16, 1
    %p97 = por %p95, %p96
    %p98 = scmp.ne.s32.totalorder %s87, %s88
    %p99 = scmp.eq.s32.totalorder %s16, 0
    %p100 = por %p98, %p99
    %p101 = scmp.ne.s32.totalorder %s87, %s88
    %p102 = scmp.eq.s32.totalorder %s17, 1
    %p103 = por %p101, %p102
    %p105 = scmp.ne.s32.totalorder %s88, %s104
    %p106 = scmp.eq.s32.totalorder %s17, 0
    %p107 = por %p105, %p106
    %s108 = ssub.s32 %s18, %s30
    %s109 = ssub.s32 %s19, %s26
    %s110 = sor.u32 %s108, %s109
    %p111 = scmp.eq.s32.totalorder %s110, 0
    %s113 = sadd.s32 %s112, 1
    %s114 = scalar_select %p111, %s112, %s113
    %p117 = pneg %p111
    %p118 = scmp.eq.s32.totalorder %s11, 1
    %p119 = por %p117, %p118
    %p120 = scmp.ne.s32.totalorder %s112, %s115
    %p121 = scmp.eq.s32.totalorder %s11, 0
    %p122 = por %p120, %p121
    %p123 = scmp.ne.s32.totalorder %s112, %s115
    %p124 = scmp.eq.s32.totalorder %s16, 1
    %p125 = por %p123, %p124
    %p126 = scmp.ne.s32.totalorder %s115, %s116
    %p127 = scmp.eq.s32.totalorder %s16, 0
    %p128 = por %p126, %p127
    %p129 = scmp.ne.s32.totalorder %s115, %s116
    %p130 = scmp.eq.s32.totalorder %s17, 1
    %p131 = por %p129, %p130
    %p133 = scmp.ne.s32.totalorder %s116, %s132
    %p134 = scmp.eq.s32.totalorder %s17, 0
    %p135 = por %p133, %p134
    %s136 = ssub.s32 %s18, %s30
    %s137 = ssub.s32 %s19, %s26
    %s138 = sor.u32 %s136, %s137
    %p139 = scmp.eq.s32.totalorder %s138, 0
    %s141 = sadd.s32 %s140, 1
    %s142 = scalar_select %p139, %s140, %s141
    %p145 = pneg %p139
    %p146 = scmp.eq.s32.totalorder %s11, 1
    %p147 = por %p145, %p146
    %p148 = scmp.ne.s32.totalorder %s140, %s143
    %p149 = scmp.eq.s32.totalorder %s11, 0
    %p150 = por %p148, %p149
    %p151 = scmp.ne.s32.totalorder %s140, %s143
    %p152 = scmp.eq.s32.totalorder %s16, 1
    %p153 = por %p151, %p152
    %p154 = scmp.ne.s32.totalorder %s143, %s144
    %p155 = scmp.eq.s32.totalorder %s16, 0
    %p156 = por %p154, %p155
    %p157 = scmp.ne.s32.totalorder %s143, %s144
    %p158 = scmp.eq.s32.totalorder %s17, 1
    %p159 = por %p157, %p158
    %p161 = scmp.ne.s32.totalorder %s144, %s160
    %p162 = scmp.eq.s32.totalorder %s17, 0
    %p163 = por %p161, %p162
    %p164 = scmp.le.s32.totalorder 1, %s11
    %p165 = scmp.lt.s32.totalorder %s11, 3
    %p166 = pnand %p164, %p165
    %p167 = pneg %p166
    // Predicated region
    $region9: #{double_conv.2} parent=5 // pred_check
      _
    $region10: #{double_conv.2} parent=5 // pred_check_branch
      %169 = sbr.rel (%p166) target = $region12
    $region11: #{double_conv.2} parent=5 // pred_region
      %s170 = ssub.s32 %s11, 1
      // Predicated region
      $region13: #{double_conv.2} parent=11 // pred_check
        %p171 = pneg %p72
      $region14: #{double_conv.2} parent=11 // pred_check_branch
        %173 = sbr.rel (%p171) target = $region16
      $region15: #{double_conv.2} parent=11 // pred_region
        _
      $region16: #{double_conv.2} parent=11 // pred_fallthru
        _
    $region12: #{double_conv.2} parent=5 // pred_fallthru
      _
    %p174 = scmp.lt.s32.totalorder %s11, 2
    // Predicated region
    $region17: #{double_conv.2} parent=5 // pred_check
      %p175 = pneg %p174
    $region18: #{double_conv.2} parent=5 // pred_check_branch
      %177 = sbr.rel (%p175) target = $region20
    $region19: #{double_conv.2} parent=5 // pred_region
      // Predicated region
      $region21: #{double_conv.2} parent=19 // pred_check
        %p178 = pneg %p45
      $region22: #{double_conv.2} parent=19 // pred_check_branch
        %180 = sbr.rel (%p178) target = $region24
      $region23: #{double_conv.2} parent=19 // pred_region
        %p181 = scmp.lt.s32.totalorder %s18, 1
        %s182 = scalar_select %p181, %s18, 1
        %p183 = scmp.lt.s32.totalorder %s19, 0
        %s184 = scalar_select %p183, %s19, 0
        %s185 = smul.addr %s184, 3
        %s186 = smul.addr %s182, 3
        %s187 = sadd.s32 %s185, %s186
        %s188 = smul.addr %s187, 8
        %s189 = scalar_lea.vmem %s0, %s188
      $region24: #{double_conv.2} parent=19 // pred_fallthru
        _
    $region20: #{double_conv.2} parent=5 // pred_fallthru
      _
    %p190 = scmp.le.s32.totalorder 1, %s11
    %p191 = scmp.lt.s32.totalorder %s11, 3
    %p192 = pnand %p190, %p191
    %p193 = pneg %p192
    // Predicated region
    $region25: #{double_conv.2} parent=5 // pred_check
      _
    $region26: #{double_conv.2} parent=5 // pred_check_branch
      %195 = sbr.rel (%p192) target = $region28
    $region27: #{double_conv.2} parent=5 // pred_region
      %s196 = ssub.s32 %s11, 1
      %p197 = scmp.lt.s32.totalorder %s20, 1
      %s198 = scalar_select %p197, %s20, 1
      %p199 = scmp.lt.s32.totalorder %s21, 0
      %s200 = scalar_select %p199, %s21, 0
      %s201 = smul.addr %s200, 3
      %s202 = smul.addr %s198, 3
      %s203 = sadd.s32 %s201, %s202
      %s204 = smul.addr %s203, 8
      %s205 = scalar_lea.vmem %s0, %s204
      %p206 = pneg %p51
      %p207 = pneg %p48
      %p208 = pneg %p72
      %p209 = pneg %p69
      %p210 = pneg %p100
      %p211 = pneg %p97
      %p212 = scmp.lt.s32.totalorder %s20, 1
      %s213 = scalar_select %p212, %s20, 1
      %p214 = scmp.lt.s32.totalorder %s21, 0
      %s215 = scalar_select %p214, %s21, 0
      %s216 = smul.addr %s215, 3
      %s217 = smul.addr %s213, 3
      %s218 = sadd.s32 %s216, %s217
      %s219 = smul.addr %s218, 8
      %s220 = scalar_lea.vmem %s2, %s219
      %p221 = pneg %p128
      %p222 = pneg %p125
      %p223 = scmp.lt.s32.totalorder %s20, 1
      %s224 = scalar_select %p223, %s20, 1
      %p225 = scmp.lt.s32.totalorder %s21, 0
      %s226 = scalar_select %p225, %s21, 0
      %s227 = sadd.s32 %s226, %s224
      %s228 = scalar_lea.vmem %s3, %s227
      %p229 = pneg %p156
      %p230 = pneg %p153
      %p231 = scmp.lt.s32.totalorder %s20, 1
      %s232 = scalar_select %p231, %s20, 1
      %p233 = scmp.lt.s32.totalorder %s21, 0
      %s234 = scalar_select %p233, %s21, 0
      %s235 = sadd.s32 %s234, %s232
      %s236 = scalar_lea.vmem %s4, %s235
      %p237 = scmp.lt.s32.totalorder %s20, 1
      %s238 = scalar_select %p237, %s20, 1
      %p239 = scmp.lt.s32.totalorder %s21, 0
      %s240 = scalar_select %p239, %s21, 0
      %s241 = smul.addr %s240, 3
      %s242 = smul.addr %s238, 3
      %s243 = sadd.s32 %s241, %s242
      %s244 = smul.addr %s243, 8
      %s245 = scalar_lea.vmem %s0, %s244
      %p246 = scmp.lt.s32.totalorder %s20, 1
      %s247 = scalar_select %p246, %s20, 1
      %p248 = scmp.lt.s32.totalorder %s21, 0
      %s249 = scalar_select %p248, %s21, 0
      %s250 = smul.addr %s249, 3
      %s251 = smul.addr %s247, 3
      %s252 = sadd.s32 %s250, %s251
      %s253 = smul.addr %s252, 8
      %s254 = scalar_lea.vmem %s2, %s253
      %p255 = scmp.lt.s32.totalorder %s20, 1
      %s256 = scalar_select %p255, %s20, 1
      %p257 = scmp.lt.s32.totalorder %s21, 0
      %s258 = scalar_select %p257, %s21, 0
      %s259 = sadd.s32 %s258, %s256
      %s260 = scalar_lea.vmem %s3, %s259
      %p261 = scmp.lt.s32.totalorder %s20, 1
      %s262 = scalar_select %p261, %s20, 1
      %p263 = scmp.lt.s32.totalorder %s21, 0
      %s264 = scalar_select %p263, %s21, 0
      %s265 = sadd.s32 %s264, %s262
      %s266 = scalar_lea.vmem %s4, %s265
      %v267 = vld [vmem:[%s245] sm:$0xff]
      %v268 = vld [vmem:[%s245 + $0x8] sm:$0xff]
      %v269 = vld [vmem:[%s245 + $0x10] sm:$0x3]
      %v270 = vld [vmem:[%s1] sm:$0xff]
      %v271 = vld [vmem:[%s1 + $0x8] sm:$0xff]
      %v272 = vld [vmem:[%s1 + $0x10] sm:$0xff]
      %v273 = vld [vmem:[%s1 + $0x18] sm:$0xff]
      %v274 = vld [vmem:[%s1 + $0x20] sm:$0xff]
      %v275 = vld [vmem:[%s1 + $0x28] sm:$0xff]
      %v276 = vld [vmem:[%s1 + $0x30] sm:$0xff]
      %v277 = vld [vmem:[%s1 + $0x38] sm:$0xff]
      %v278 = vld [vmem:[%s245 + $0x1] sm:$0xff]
      %v279 = vld [vmem:[%s245 + $0x9] sm:$0xff]
      %v280 = vld [vmem:[%s245 + $0x11] sm:$0x3]
      %s281 = scalar_lea.vmem %s1, 64
      %v282 = vld [vmem:[%s281] sm:$0xff]
      %v283 = vld [vmem:[%s281 + $0x8] sm:$0xff]
      %v284 = vld [vmem:[%s281 + $0x10] sm:$0xff]
      %v285 = vld [vmem:[%s281 + $0x18] sm:$0xff]
      %v286 = vld [vmem:[%s281 + $0x20] sm:$0xff]
      %v287 = vld [vmem:[%s281 + $0x28] sm:$0xff]
      %v288 = vld [vmem:[%s281 + $0x30] sm:$0xff]
      %v289 = vld [vmem:[%s281 + $0x38] sm:$0xff]
      %vm290 = vcmask 523264
      %v292 = vsel %vm290, %v278, 0
      %v295 = vsel %vm290, %v279, 0
      %v298 = vsel %vm290, %v280, 0
      %300 = vmatpush.msra.mxu0 0.0
      %301 = vmatpush.msra.mxu0 0.0
      %302 = vmatpush.msra.mxu0 0.0
      %303 = vmatpush.msra.mxu0 0.0
      %304 = vmatpush.msra.mxu0 0.0
      %305 = vmatpush.msra.mxu0 0.0
      %306 = vmatpush.msra.mxu0 0.0
      %307 = vmatpush.msra.mxu0 0.0
      %308 = vmatpush.msra.mxu0 %v289
      %309 = vmatpush.msra.mxu0 %v288
      %310 = vmatpush.msra.mxu0 %v287
      %311 = vmatpush.msra.mxu0 %v286
      %312 = vmatpush.msra.mxu0 %v285
      %313 = vmatpush.msra.mxu0 %v284
      %314 = vmatpush.msra.mxu0 %v283
      %315 = vmatpush.msra.mxu0 %v282
      %316 = vmatmul.f32.gmra.mxu0 %v292
      %v317 = vpop.f32.mrf.mxu0
      %v318 = vadd.f32 0.0, %v317
      %319 = vmatmul.f32.gmra.mxu0 %v295
      %v320 = vpop.f32.mrf.mxu0
      %v321 = vadd.f32 0.0, %v320
      %322 = vmatmul.f32.gmra.mxu0 %v298
      %v323 = vpop.f32.mrf.mxu0
      %v324 = vadd.f32 0.0, %v323
      %325 = vdwg.mxu0
      %v327 = vsel %vm290, %v267, 0
      %v330 = vsel %vm290, %v268, 0
      %v333 = vsel %vm290, %v269, 0
      %335 = vmatpush.msra.mxu0 0.0
      %336 = vmatpush.msra.mxu0 0.0
      %337 = vmatpush.msra.mxu0 0.0
      %338 = vmatpush.msra.mxu0 0.0
      %339 = vmatpush.msra.mxu0 0.0
      %340 = vmatpush.msra.mxu0 0.0
      %341 = vmatpush.msra.mxu0 0.0
      %342 = vmatpush.msra.mxu0 0.0
      %343 = vmatpush.msra.mxu0 %v277
      %344 = vmatpush.msra.mxu0 %v276
      %345 = vmatpush.msra.mxu0 %v275
      %346 = vmatpush.msra.mxu0 %v274
      %347 = vmatpush.msra.mxu0 %v273
      %348 = vmatpush.msra.mxu0 %v272
      %349 = vmatpush.msra.mxu0 %v271
      %350 = vmatpush.msra.mxu0 %v270
      %351 = vmatmul.f32.gmra.mxu0 %v327
      %v352 = vpop.f32.mrf.mxu0
      %v353 = vadd.f32 %v318, %v352
      %354 = vmatmul.f32.gmra.mxu0 %v330
      %v355 = vpop.f32.mrf.mxu0
      %v356 = vadd.f32 %v321, %v355
      %357 = vmatmul.f32.gmra.mxu0 %v333
      %v358 = vpop.f32.mrf.mxu0
      %v359 = vadd.f32 %v324, %v358
      %360 = vdwg.mxu0
      %v361 = vld [vmem:[%s245 + $0x2] sm:$0xff]
      %v362 = vld [vmem:[%s245 + $0xa] sm:$0xff]
      %v363 = vld [vmem:[%s245 + $0x12] sm:$0x3]
      %s364 = scalar_lea.vmem %s1, 128
      %v365 = vld [vmem:[%s364] sm:$0xff]
      %v366 = vld [vmem:[%s364 + $0x8] sm:$0xff]
      %v367 = vld [vmem:[%s364 + $0x10] sm:$0xff]
      %v368 = vld [vmem:[%s364 + $0x18] sm:$0xff]
      %v369 = vld [vmem:[%s364 + $0x20] sm:$0xff]
      %v370 = vld [vmem:[%s364 + $0x28] sm:$0xff]
      %v371 = vld [vmem:[%s364 + $0x30] sm:$0xff]
      %v372 = vld [vmem:[%s364 + $0x38] sm:$0xff]
      %v374 = vsel %vm290, %v361, 0
      %v377 = vsel %vm290, %v362, 0
      %v380 = vsel %vm290, %v363, 0
      %382 = vmatpush.msra.mxu0 0.0
      %383 = vmatpush.msra.mxu0 0.0
      %384 = vmatpush.msra.mxu0 0.0
      %385 = vmatpush.msra.mxu0 0.0
      %386 = vmatpush.msra.mxu0 0.0
      %387 = vmatpush.msra.mxu0 0.0
      %388 = vmatpush.msra.mxu0 0.0
      %389 = vmatpush.msra.mxu0 0.0
      %390 = vmatpush.msra.mxu0 %v372
      %391 = vmatpush.msra.mxu0 %v371
      %392 = vmatpush.msra.mxu0 %v370
      %393 = vmatpush.msra.mxu0 %v369
      %394 = vmatpush.msra.mxu0 %v368
      %395 = vmatpush.msra.mxu0 %v367
      %396 = vmatpush.msra.mxu0 %v366
      %397 = vmatpush.msra.mxu0 %v365
      %398 = vmatmul.f32.gmra.mxu0 %v374
      %v399 = vpop.f32.mrf.mxu0
      %v400 = vadd.f32 0.0, %v399
      %401 = vmatmul.f32.gmra.mxu0 %v377
      %v402 = vpop.f32.mrf.mxu0
      %v403 = vadd.f32 0.0, %v402
      %404 = vmatmul.f32.gmra.mxu0 %v380
      %v405 = vpop.f32.mrf.mxu0
      %v406 = vadd.f32 0.0, %v405
      %407 = vdwg.mxu0
      %v408 = vadd.f32 %v353, %v400
      %v409 = vadd.f32 %v356, %v403
      %v410 = vadd.f32 %v359, %v406
      %411 = vst [vmem:[%s254] sm:$0xff] %v408
      %412 = vst [vmem:[%s254 + $0x8] sm:$0xff] %v409
      %413 = vst [vmem:[%s254 + $0x10] sm:$0x3] %v410
      %vm417 = vcmask 1046528
      %v418 = vrot.slane %v408, 1
      %v419 = vrot.slane %v409, 1
      %v420 = vsel %vm417, %v418, %v419
      %v421 = vrot.slane %v410, 1
      %v422 = vsel %vm417, %v419, %v421
      %v425 = vadd.f32 %v420, %v422
      %v426 = vrot.slane %v425, 4
      %v427 = vadd.f32 %v425, %v426
      %v428 = vrot.slane %v427, 2
      %v429 = vadd.f32 %v427, %v428
      %v430 = vrot.slane %v429, 1
      %v431 = vadd.f32 %v429, %v430
      %432 = vst [vmem:[%s260] sm:$0x1] %v431
      %v433 = vmul.f32 %v408, %v408
      %v434 = vmul.f32 %v409, %v409
      %v435 = vmul.f32 %v410, %v410
      %v439 = vrot.slane %v433, 1
      %v440 = vrot.slane %v434, 1
      %v441 = vsel %vm417, %v439, %v440
      %v442 = vrot.slane %v435, 1
      %v443 = vsel %vm417, %v440, %v442
      %v446 = vadd.f32 %v441, %v443
      %v447 = vrot.slane %v446, 4
      %v448 = vadd.f32 %v446, %v447
      %v449 = vrot.slane %v448, 2
      %v450 = vadd.f32 %v448, %v449
      %v451 = vrot.slane %v450, 1
      %v452 = vadd.f32 %v450, %v451
      %453 = vst [vmem:[%s266] sm:$0x1] %v452
      %p454 = scmp.lt.s32.totalorder %s20, 1
      %s455 = scalar_select %p454, %s20, 1
      %p456 = scmp.lt.s32.totalorder %s21, 0
      %s457 = scalar_select %p456, %s21, 0
      %s458 = smul.addr %s457, 3
      %s459 = smul.addr %s455, 3
      %s460 = sadd.s32 %s458, %s459
      %s461 = smul.addr %s460, 8
      %s462 = scalar_lea.vmem %s2, %s461
      %p463 = scmp.lt.s32.totalorder %s20, 1
      %s464 = scalar_select %p463, %s20, 1
      %p465 = scmp.lt.s32.totalorder %s21, 0
      %s466 = scalar_select %p465, %s21, 0
      %s467 = sadd.s32 %s466, %s464
      %s468 = scalar_lea.vmem %s3, %s467
      %p469 = scmp.lt.s32.totalorder %s20, 1
      %s470 = scalar_select %p469, %s20, 1
      %p471 = scmp.lt.s32.totalorder %s21, 0
      %s472 = scalar_select %p471, %s21, 0
      %s473 = sadd.s32 %s472, %s470
      %s474 = scalar_lea.vmem %s4, %s473
      // Predicated region
      $region29: #{double_conv.2} parent=27 // pred_check
        %p475 = pneg %p97
      $region30: #{double_conv.2} parent=27 // pred_check_branch
        %477 = sbr.rel (%p475) target = $region32
      $region31: #{double_conv.2} parent=27 // pred_region
        _
      $region32: #{double_conv.2} parent=27 // pred_fallthru
        _
      // Predicated region
      $region33: #{double_conv.2} parent=27 // pred_check
        %p478 = pneg %p125
      $region34: #{double_conv.2} parent=27 // pred_check_branch
        %480 = sbr.rel (%p478) target = $region36
      $region35: #{double_conv.2} parent=27 // pred_region
        _
      $region36: #{double_conv.2} parent=27 // pred_fallthru
        _
      // Predicated region
      $region37: #{double_conv.2} parent=27 // pred_check
        %p481 = pneg %p153
      $region38: #{double_conv.2} parent=27 // pred_check_branch
        %483 = sbr.rel (%p481) target = $region40
      $region39: #{double_conv.2} parent=27 // pred_region
        _
      $region40: #{double_conv.2} parent=27 // pred_fallthru
        _
    $region28: #{double_conv.2} parent=5 // pred_fallthru
      _
    %p484 = scmp.le.s32.totalorder 2, %s11
    // Predicated region
    $region41: #{double_conv.2} parent=5 // pred_check
      %p485 = pneg %p484
    $region42: #{double_conv.2} parent=5 // pred_check_branch
      %487 = sbr.rel (%p485) target = $region44
    $region43: #{double_conv.2} parent=5 // pred_region
      %s488 = ssub.s32 %s11, 2
      // Predicated region
      $region45: #{double_conv.2} parent=43 // pred_check
        %p489 = pneg %p103
      $region46: #{double_conv.2} parent=43 // pred_check_branch
        %491 = sbr.rel (%p489) target = $region48
      $region47: #{double_conv.2} parent=43 // pred_region
        %p492 = scmp.lt.s32.totalorder %s22, 1
        %s493 = scalar_select %p492, %s22, 1
        %p494 = scmp.lt.s32.totalorder %s23, 0
        %s495 = scalar_select %p494, %s23, 0
        %s496 = smul.addr %s495, 3
        %s497 = smul.addr %s493, 3
        %s498 = sadd.s32 %s496, %s497
        %s499 = smul.addr %s498, 8
        %s500 = scalar_lea.vmem %s2, %s499
      $region48: #{double_conv.2} parent=43 // pred_fallthru
        _
      // Predicated region
      $region49: #{double_conv.2} parent=43 // pred_check
        %p501 = pneg %p131
      $region50: #{double_conv.2} parent=43 // pred_check_branch
        %503 = sbr.rel (%p501) target = $region52
      $region51: #{double_conv.2} parent=43 // pred_region
        %p504 = scmp.lt.s32.totalorder %s22, 1
        %s505 = scalar_select %p504, %s22, 1
        %p506 = scmp.lt.s32.totalorder %s23, 0
        %s507 = scalar_select %p506, %s23, 0
        %s508 = sadd.s32 %s507, %s505
        %s509 = scalar_lea.vmem %s3, %s508
      $region52: #{double_conv.2} parent=43 // pred_fallthru
        _
      // Predicated region
      $region53: #{double_conv.2} parent=43 // pred_check
        %p510 = pneg %p159
      $region54: #{double_conv.2} parent=43 // pred_check_branch
        %512 = sbr.rel (%p510) target = $region56
      $region55: #{double_conv.2} parent=43 // pred_region
        %p513 = scmp.lt.s32.totalorder %s22, 1
        %s514 = scalar_select %p513, %s22, 1
        %p515 = scmp.lt.s32.totalorder %s23, 0
        %s516 = scalar_select %p515, %s23, 0
        %s517 = sadd.s32 %s516, %s514
        %s518 = scalar_lea.vmem %s4, %s517
      $region56: #{double_conv.2} parent=43 // pred_fallthru
        _
    $region44: #{double_conv.2} parent=5 // pred_fallthru
      _
  $region6: #{double_conv.2} parent=0 // loop_footer
    %s15 = sadd.s32 1, %s11
  $region7: #{double_conv.2} parent=0 // loop_footer_branch
    %10 = sbr.rel target = $region3
  $region8: #{double_conv.2} parent=0 // loop_exit
    _

</llo_original>
